<compile_context>
chip_gen: v7x
topology: tpu7x:2x2x1
jax: 0.10.0
libtpu: 0.0.40
codegen_flags: <defaults>
</compile_context>

<pallas_src>
import jax
import jax.numpy as jnp
from jax.experimental import pallas as pl
from jax.experimental.pallas import tpu as pltpu

# Logical / lane-padded dimensions.
IN_DIM, IN_PAD = 110, 128          # 100 noise + 10 label-embedding -> pad to 128
H1, H2 = 256, 512
OUT_DIM, OUT_PAD = 784, 896        # 784 -> 7 * 128


# ----------------------------------------------------------------------------
# Pallas kernel: fused 3-layer MLP  (Linear+ReLU, Linear+ReLU, Linear+Tanh)
# x/w in bf16 on the MXU, f32 accumulation, f32 bias-add / ReLU / tanh.
# ----------------------------------------------------------------------------
def _generator_mlp_kernel(x_ref, w1_ref, b1_ref, w2_ref, b2_ref,
                          w3_ref, b3_ref, o_ref):
    h1 = jnp.dot(x_ref[...], w1_ref[...], preferred_element_type=jnp.float32)
    h1 = jnp.maximum(h1 + b1_ref[...], 0.0)                       # ReLU (f32)
    h2 = jnp.dot(h1.astype(jnp.bfloat16), w2_ref[...],
                 preferred_element_type=jnp.float32)
    h2 = jnp.maximum(h2 + b2_ref[...], 0.0)                       # ReLU (f32)
    h3 = jnp.dot(h2.astype(jnp.bfloat16), w3_ref[...],
                 preferred_element_type=jnp.float32)
    o_ref[...] = jnp.tanh(h3 + b3_ref[...])                       # Tanh (f32)


def _choose_batch_tile(batch):
    padded = ((batch + 7) // 8) * 8          # sublane multiple
    return min(256, padded)                  # fill the MXU M dim when possible


def generator_mlp(x_bf16, w1, b1, w2, b2, w3, b3, *, tb):
    """x_bf16: (pB, 128) bf16, pB % tb == 0 -> (pB, 896) f32."""
    pB = x_bf16.shape[0]
    grid = (pB // tb,)

    def resident(shape):                     # weights/biases: constant block idx
        return pl.BlockSpec(shape, lambda i: (0,) * len(shape))

    flops = 2 * pB * (IN_PAD * H1 + H1 * H2 + H2 * OUT_PAD)
    bytes_accessed = (2 * (IN_PAD * H1 + H1 * H2 + H2 * OUT_PAD)   # bf16 weights
                      + 4 * (H1 + H2 + OUT_PAD)                    # f32 biases
                      + 2 * pB * IN_PAD                            # bf16 input
                      + 4 * pB * OUT_PAD)                          # f32 output

    return pl.pallas_call(
        _generator_mlp_kernel,
        out_shape=jax.ShapeDtypeStruct((pB, OUT_PAD), jnp.float32),
        grid_spec=pltpu.PrefetchScalarGridSpec(
            num_scalar_prefetch=0,
            grid=grid,
            in_specs=[
                pl.BlockSpec((tb, IN_PAD), lambda i: (i, 0)),      # x tile
                resident((IN_PAD, H1)), resident((1, H1)),
                resident((H1, H2)),     resident((1, H2)),
                resident((H2, OUT_PAD)), resident((1, OUT_PAD)),
            ],
            out_specs=pl.BlockSpec((tb, OUT_PAD), lambda i: (i, 0)),
        ),
        compiler_params=pltpu.CompilerParams(
            dimension_semantics=("parallel",),       # megacore / v7x 2-TC split
            vmem_limit_bytes=16 << 20,               # honest limit, works on v7x
        ),
        cost_estimate=pl.CostEstimate(
            flops=flops,
            transcendentals=pB * OUT_PAD,
            bytes_accessed=bytes_accessed),
    )(x_bf16, w1, b1, w2, b2, w3, b3)


# ----------------------------------------------------------------------------
# Parameter init (deterministic, PyTorch-like uniform(-1/sqrt(fan_in), +..))
# ----------------------------------------------------------------------------
def init_generator_params(key):
    ks = jax.random.split(key, 7)

    def linear_init(kw, kb, fan_in, fan_out):
        bound = 1.0 / (fan_in ** 0.5)
        w = jax.random.uniform(kw, (fan_in, fan_out), jnp.float32, -bound, bound)
        b = jax.random.uniform(kb, (1, fan_out), jnp.float32, -bound, bound)
        return w, b

    emb = jax.random.normal(ks[0], (10, 10), jnp.float32)   # nn.Embedding(10,10)
    w1, b1 = linear_init(ks[1], ks[2], IN_DIM, H1)
    w2, b2 = linear_init(ks[3], ks[4], H1, H2)
    w3, b3 = linear_init(ks[5], ks[6], H2, OUT_DIM)
    return dict(emb=emb, w1=w1, b1=b1, w2=w2, b2=b2, w3=w3, b3=b3)


# ----------------------------------------------------------------------------
# Forward pass: tiny JAX glue (gather + concat + pad/cast), hot path in Pallas.
# ----------------------------------------------------------------------------
@jax.jit
def generator_forward(params, noise, labels):
    B = noise.shape[0]
    emb = jnp.take(params["emb"], labels, axis=0)            # (B, 10)
    x = jnp.concatenate([noise, emb], axis=-1)               # (B, 110)

    # Batch pad to a tile multiple, feature pad 110 -> 128, cast to bf16.
    tb = _choose_batch_tile(B)
    pB = ((B + tb - 1) // tb) * tb
    x_pad = jnp.zeros((pB, IN_PAD), jnp.float32).at[:B, :IN_DIM].set(x)
    x_bf16 = x_pad.astype(jnp.bfloat16)

    # bf16 weights; zero-pad w1 rows (110->128) and w3/b3 cols (784->896).
    w1 = jnp.zeros((IN_PAD, H1), jnp.bfloat16).at[:IN_DIM, :].set(
        params["w1"].astype(jnp.bfloat16))
    w2 = params["w2"].astype(jnp.bfloat16)
    w3 = jnp.zeros((H2, OUT_PAD), jnp.bfloat16).at[:, :OUT_DIM].set(
        params["w3"].astype(jnp.bfloat16))
    b3 = jnp.zeros((1, OUT_PAD), jnp.float32).at[:, :OUT_DIM].set(params["b3"])

    out = generator_mlp(x_bf16, w1, params["b1"], w2, params["b2"], w3, b3,
                        tb=tb)                               # (pB, 896) f32
    img = out[:B, :OUT_DIM]                                  # (B, 784)
    return img.reshape(-1, 1, 28, 28)                        # NCHW, like .view


# ----------------------------------------------------------------------------
# References (numerics-matched bf16 ref + full-precision f32 ref)
# ----------------------------------------------------------------------------
def generator_forward_ref(params, noise, labels, use_bf16=True):
    cast = (lambda a: a.astype(jnp.bfloat16)) if use_bf16 else (lambda a: a)
    emb = jnp.take(params["emb"], labels, axis=0)
    x = jnp.concatenate([noise, emb], axis=-1)
    h1 = jnp.maximum(
        jnp.dot(cast(x), cast(params["w1"]),
                preferred_element_type=jnp.float32) + params["b1"], 0.0)
    h2 = jnp.maximum(
        jnp.dot(cast(h1), cast(params["w2"]),
                preferred_element_type=jnp.float32) + params["b2"], 0.0)
    h3 = jnp.tanh(
        jnp.dot(cast(h2), cast(params["w3"]),
                preferred_element_type=jnp.float32) + params["b3"])
    return h3.reshape(-1, 1, 28, 28)


if __name__ == "__main__":
    key = jax.random.PRNGKey(0)
    k_params, k_noise, k_labels = jax.random.split(key, 3)

    B = 8
    params = init_generator_params(k_params)
    noise = jax.random.normal(k_noise, (B, 100), jnp.float32)
    labels = jax.random.randint(k_labels, (B,), 0, 10, jnp.int32)

    out = jax.block_until_ready(generator_forward(params, noise, labels))
    assert out.shape == (B, 1, 28, 28), out.shape

    # Tight check vs. a reference with identical bf16-weight / f32-acc numerics.
    ref_bf16 = jax.block_until_ready(
        generator_forward_ref(params, noise, labels, use_bf16=True))
    err = float(jnp.max(jnp.abs(out - ref_bf16)))
    assert jnp.allclose(out, ref_bf16, atol=2e-3, rtol=2e-3), err

    # Loose sanity check vs. full-f32 reference (tanh outputs in [-1, 1]).
    ref_f32 = jax.block_until_ready(
        generator_forward_ref(params, noise, labels, use_bf16=False))
    err32 = float(jnp.max(jnp.abs(out - ref_f32)))
    assert jnp.allclose(out, ref_f32, atol=6e-2), err32

    print("KERNEL_OK")
</pallas_src>

<mosaic_0001>
module attributes {stable_mosaic.version = 11 : i64} {
  func.func @_generator_mlp_kernel(%arg0: i32, %arg1: memref<8x128xbf16, #tpu.memory_space<vmem>>, %arg2: memref<128x256xbf16, #tpu.memory_space<vmem>>, %arg3: memref<1x256xf32, #tpu.memory_space<vmem>>, %arg4: memref<256x512xbf16, #tpu.memory_space<vmem>>, %arg5: memref<1x512xf32, #tpu.memory_space<vmem>>, %arg6: memref<512x896xbf16, #tpu.memory_space<vmem>>, %arg7: memref<1x896xf32, #tpu.memory_space<vmem>>, %arg8: memref<8x896xf32, #tpu.memory_space<vmem>>) attributes {dimension_semantics = [#tpu.dimension_semantics<parallel>], iteration_bounds = array<i64: 1>, scalar_prefetch = 0 : i64, scratch_operands = 0 : i64, tpu.core_type = #tpu.core_type<tc>, window_params = [{transform_indices = @transform_0, window_bounds = array<i64: 8, 128>}, {pipeline_mode = #tpu.pipeline_mode<synchronous>, transform_indices = @transform_1, window_bounds = array<i64: 128, 256>}, {pipeline_mode = #tpu.pipeline_mode<synchronous>, transform_indices = @transform_2, window_bounds = array<i64: 1, 256>}, {pipeline_mode = #tpu.pipeline_mode<synchronous>, transform_indices = @transform_3, window_bounds = array<i64: 256, 512>}, {pipeline_mode = #tpu.pipeline_mode<synchronous>, transform_indices = @transform_4, window_bounds = array<i64: 1, 512>}, {pipeline_mode = #tpu.pipeline_mode<synchronous>, transform_indices = @transform_5, window_bounds = array<i64: 512, 896>}, {pipeline_mode = #tpu.pipeline_mode<synchronous>, transform_indices = @transform_6, window_bounds = array<i64: 1, 896>}, {transform_indices = @transform_7, window_bounds = array<i64: 8, 896>}]} {
    %c0 = arith.constant 0 : index
    %c0_0 = arith.constant 0 : index
    %0 = vector.load %arg1[%c0, %c0_0] : memref<8x128xbf16, #tpu.memory_space<vmem>>, vector<8x128xbf16>
    %c0_1 = arith.constant 0 : index
    %c0_2 = arith.constant 0 : index
    %1 = vector.load %arg2[%c0_1, %c0_2] : memref<128x256xbf16, #tpu.memory_space<vmem>>, vector<128x256xbf16>
    %cst = arith.constant dense<0.000000e+00> : vector<8x256xf32>
    %2 = tpu.matmul %0, %1, %cst {dimension_numbers = #tpu.dot_dimension_numbers<[1], [0], [0], [1], [0, 0, 1, 1], [], []>} : vector<8x128xbf16>, vector<128x256xbf16>, vector<8x256xf32> -> vector<8x256xf32>
    %c0_3 = arith.constant 0 : index
    %c0_4 = arith.constant 0 : index
    %3 = vector.load %arg3[%c0_3, %c0_4] : memref<1x256xf32, #tpu.memory_space<vmem>>, vector<1x256xf32>
    %4 = vector.broadcast %3 : vector<1x256xf32> to vector<8x256xf32>
    %5 = arith.addf %2, %4 : vector<8x256xf32>
    %cst_5 = arith.constant 0.000000e+00 : f32
    %6 = vector.broadcast %cst_5 : f32 to vector<8x256xf32>
    %7 = arith.maximumf %5, %6 : vector<8x256xf32>
    %8 = arith.truncf %7 : vector<8x256xf32> to vector<8x256xbf16>
    %c0_6 = arith.constant 0 : index
    %c0_7 = arith.constant 0 : index
    %9 = vector.load %arg4[%c0_6, %c0_7] : memref<256x512xbf16, #tpu.memory_space<vmem>>, vector<256x512xbf16>
    %cst_8 = arith.constant dense<0.000000e+00> : vector<8x512xf32>
    %10 = tpu.matmul %8, %9, %cst_8 {dimension_numbers = #tpu.dot_dimension_numbers<[1], [0], [0], [1], [0, 0, 1, 1], [], []>} : vector<8x256xbf16>, vector<256x512xbf16>, vector<8x512xf32> -> vector<8x512xf32>
    %c0_9 = arith.constant 0 : index
    %c0_10 = arith.constant 0 : index
    %11 = vector.load %arg5[%c0_9, %c0_10] : memref<1x512xf32, #tpu.memory_space<vmem>>, vector<1x512xf32>
    %12 = vector.broadcast %11 : vector<1x512xf32> to vector<8x512xf32>
    %13 = arith.addf %10, %12 : vector<8x512xf32>
    %cst_11 = arith.constant 0.000000e+00 : f32
    %14 = vector.broadcast %cst_11 : f32 to vector<8x512xf32>
    %15 = arith.maximumf %13, %14 : vector<8x512xf32>
    %16 = arith.truncf %15 : vector<8x512xf32> to vector<8x512xbf16>
    %c0_12 = arith.constant 0 : index
    %c0_13 = arith.constant 0 : index
    %17 = vector.load %arg6[%c0_12, %c0_13] : memref<512x896xbf16, #tpu.memory_space<vmem>>, vector<512x896xbf16>
    %cst_14 = arith.constant dense<0.000000e+00> : vector<8x896xf32>
    %18 = tpu.matmul %16, %17, %cst_14 {dimension_numbers = #tpu.dot_dimension_numbers<[1], [0], [0], [1], [0, 0, 1, 1], [], []>} : vector<8x512xbf16>, vector<512x896xbf16>, vector<8x896xf32> -> vector<8x896xf32>
    %c0_15 = arith.constant 0 : index
    %c0_16 = arith.constant 0 : index
    %19 = vector.load %arg7[%c0_15, %c0_16] : memref<1x896xf32, #tpu.memory_space<vmem>>, vector<1x896xf32>
    %20 = vector.broadcast %19 : vector<1x896xf32> to vector<8x896xf32>
    %21 = arith.addf %18, %20 : vector<8x896xf32>
    %22 = math.tanh %21 : vector<8x896xf32>
    %c0_17 = arith.constant 0 : index
    %c0_18 = arith.constant 0 : index
    %23 = vector.load %arg8[%c0_17, %c0_18] : memref<8x896xf32, #tpu.memory_space<vmem>>, vector<8x896xf32>
    tpu.vector_store %arg8[%c0_17, %c0_18], %22 {strides = array<i32>} : memref<8x896xf32, #tpu.memory_space<vmem>>, vector<8x896xf32>,
    return
  }
  func.func @transform_0(%arg0: i32) -> (i32, i32) {
    %c0_i32 = arith.constant 0 : i32
    %c0_i32_0 = arith.constant 0 : i32
    return %arg0, %c0_i32 : i32, i32
  }
  func.func @transform_1(%arg0: i32) -> (i32, i32) {
    %c0_i32 = arith.constant 0 : i32
    %c0_i32_0 = arith.constant 0 : i32
    %c0_i32_1 = arith.constant 0 : i32
    return %c0_i32, %c0_i32_0 : i32, i32
  }
  func.func @transform_2(%arg0: i32) -> (i32, i32) {
    %c0_i32 = arith.constant 0 : i32
    %c0_i32_0 = arith.constant 0 : i32
    %c0_i32_1 = arith.constant 0 : i32
    return %c0_i32, %c0_i32_0 : i32, i32
  }
  func.func @transform_3(%arg0: i32) -> (i32, i32) {
    %c0_i32 = arith.constant 0 : i32
    %c0_i32_0 = arith.constant 0 : i32
    %c0_i32_1 = arith.constant 0 : i32
    return %c0_i32, %c0_i32_0 : i32, i32
  }
  func.func @transform_4(%arg0: i32) -> (i32, i32) {
    %c0_i32 = arith.constant 0 : i32
    %c0_i32_0 = arith.constant 0 : i32
    %c0_i32_1 = arith.constant 0 : i32
    return %c0_i32, %c0_i32_0 : i32, i32
  }
  func.func @transform_5(%arg0: i32) -> (i32, i32) {
    %c0_i32 = arith.constant 0 : i32
    %c0_i32_0 = arith.constant 0 : i32
    %c0_i32_1 = arith.constant 0 : i32
    return %c0_i32, %c0_i32_0 : i32, i32
  }
  func.func @transform_6(%arg0: i32) -> (i32, i32) {
    %c0_i32 = arith.constant 0 : i32
    %c0_i32_0 = arith.constant 0 : i32
    %c0_i32_1 = arith.constant 0 : i32
    return %c0_i32, %c0_i32_0 : i32, i32
  }
  func.func @transform_7(%arg0: i32) -> (i32, i32) {
    %c0_i32 = arith.constant 0 : i32
    %c0_i32_0 = arith.constant 0 : i32
    return %arg0, %c0_i32 : i32, i32
  }
}

</mosaic_0001>

<llo_original>
// kernel: generator_forward.1
$region0: #{generator_forward.1}
  #allocation0 [shape = 'u32[]', space=smem, size = 0x4, offset = 0x4, fixed_abs, tag = 'smem constant byte address 0x4 - core index']
  #allocation1 [shape = 'u32[144,128]{1,0:T(1,128)}', space=vmem, size = 0x12000, scoped, tag = 'internal scratch']
  %s0 = inlined_call_operand.vmem [shape: bf16[8,128], index: 0, kind: input, shape index: {}]
  %s1 = inlined_call_operand.vmem [shape: bf16[128,256], index: 1, kind: input, shape index: {}]
  %s2 = inlined_call_operand.vmem [shape: f32[1,256], index: 2, kind: input, shape index: {}]
  %s3 = inlined_call_operand.vmem [shape: bf16[256,512], index: 3, kind: input, shape index: {}]
  %s4 = inlined_call_operand.vmem [shape: f32[1,512], index: 4, kind: input, shape index: {}]
  %s5 = inlined_call_operand.vmem [shape: bf16[512,896], index: 5, kind: input, shape index: {}]
  %s6 = inlined_call_operand.vmem [shape: f32[1,896], index: 6, kind: input, shape index: {}]
  %s7 = inlined_call_operand.vmem [shape: f32[8,896], index: 7, kind: output, shape index: {}]
  %s8 = sld [smem:[#allocation0]]
  $region38: #{generator_forward.1} parent=0
    _
  %s10 = ssub.s32 1, %s8
  %s11 = scalar_select 0, %s10, %s8
  // Predicated region
  $region2: #{generator_forward.1} parent=0 // pred_check
    _
  $region3: #{generator_forward.1} parent=0 // pred_check_branch
    %13 = sbr.rel (0) target = $region5
  $region4: #{generator_forward.1} parent=0 // pred_region
    _
  $region5: #{generator_forward.1} parent=0 // pred_fallthru
    _
  // Predicated region
  $region6: #{generator_forward.1} parent=0 // pred_check
    _
  $region7: #{generator_forward.1} parent=0 // pred_check_branch
    %15 = sbr.rel (0) target = $region9
  $region8: #{generator_forward.1} parent=0 // pred_region
    _
  $region9: #{generator_forward.1} parent=0 // pred_fallthru
    _
  // Predicated region
  $region10: #{generator_forward.1} parent=0 // pred_check
    _
  $region11: #{generator_forward.1} parent=0 // pred_check_branch
    %17 = sbr.rel (0) target = $region13
  $region12: #{generator_forward.1} parent=0 // pred_region
    _
  $region13: #{generator_forward.1} parent=0 // pred_fallthru
    _
  // Predicated region
  $region14: #{generator_forward.1} parent=0 // pred_check
    _
  $region15: #{generator_forward.1} parent=0 // pred_check_branch
    %19 = sbr.rel (0) target = $region17
  $region16: #{generator_forward.1} parent=0 // pred_region
    _
  $region17: #{generator_forward.1} parent=0 // pred_fallthru
    _
  // Predicated region
  $region18: #{generator_forward.1} parent=0 // pred_check
    _
  $region19: #{generator_forward.1} parent=0 // pred_check_branch
    %21 = sbr.rel (0) target = $region21
  $region20: #{generator_forward.1} parent=0 // pred_region
    _
  $region21: #{generator_forward.1} parent=0 // pred_fallthru
    _
  // Predicated region
  $region22: #{generator_forward.1} parent=0 // pred_check
    _
  $region23: #{generator_forward.1} parent=0 // pred_check_branch
    %23 = sbr.rel (0) target = $region25
  $region24: #{generator_forward.1} parent=0 // pred_region
    _
  $region25: #{generator_forward.1} parent=0 // pred_fallthru
    _
  // Predicated region
  $region26: #{generator_forward.1} parent=0 // pred_check
    _
  $region27: #{generator_forward.1} parent=0 // pred_check_branch
    %25 = sbr.rel (0) target = $region29
  $region28: #{generator_forward.1} parent=0 // pred_region
    _
  $region29: #{generator_forward.1} parent=0 // pred_fallthru
    _
  %v27 = vld [vmem:[%s0] sm:$0xf]
  %v28 = vld [vmem:[%s1] sm:$0xff]
  %v29 = vld [vmem:[%s1 + $0x8] sm:$0xff]
  %v30 = vld [vmem:[%s1 + $0x10] sm:$0xff]
  %v31 = vld [vmem:[%s1 + $0x18] sm:$0xff]
  %v32 = vld [vmem:[%s1 + $0x20] sm:$0xff]
  %v33 = vld [vmem:[%s1 + $0x28] sm:$0xff]
  %v34 = vld [vmem:[%s1 + $0x30] sm:$0xff]
  %v35 = vld [vmem:[%s1 + $0x38] sm:$0xff]
  %v36 = vld [vmem:[%s1 + $0x40] sm:$0xff]
  %v37 = vld [vmem:[%s1 + $0x48] sm:$0xff]
  %v38 = vld [vmem:[%s1 + $0x50] sm:$0xff]
  %v39 = vld [vmem:[%s1 + $0x58] sm:$0xff]
  %v40 = vld [vmem:[%s1 + $0x60] sm:$0xff]
  %v41 = vld [vmem:[%s1 + $0x68] sm:$0xff]
  %v42 = vld [vmem:[%s1 + $0x70] sm:$0xff]
  %v43 = vld [vmem:[%s1 + $0x78] sm:$0xff]
  %v44 = vld [vmem:[%s2] sm:$0x3]
  %v46 = vlaneseq
  %v47 = vshrl.u32 %v46, 7
  %v48 = vsub.s32 0, %v47
  %v49 = vrot.slane %v44, %v48
  %v50 = vlaneseq
  %v51 = vshrl.u32 %v50, 7
  %v52 = vsub.s32 1, %v51
  %v53 = vrot.slane %v44, %v52
  %v72 = vunpack.c.l.b16 %v28
  %v73 = vunpack.c.h.b16 %v28
  %v74 = vunpack.c.l.b16 %v29
  %v75 = vunpack.c.h.b16 %v29
  %v76 = vunpack.c.l.b16 %v30
  %v77 = vunpack.c.h.b16 %v30
  %v78 = vunpack.c.l.b16 %v31
  %v79 = vunpack.c.h.b16 %v31
  %v80 = vunpack.c.l.b16 %v32
  %v81 = vunpack.c.h.b16 %v32
  %v82 = vunpack.c.l.b16 %v33
  %v83 = vunpack.c.h.b16 %v33
  %v84 = vunpack.c.l.b16 %v34
  %v85 = vunpack.c.h.b16 %v34
  %v86 = vunpack.c.l.b16 %v35
  %v87 = vunpack.c.h.b16 %v35
  %v88 = vunpack.c.l.b16 %v36
  %v89 = vunpack.c.h.b16 %v36
  %v90 = vunpack.c.l.b16 %v37
  %v91 = vunpack.c.h.b16 %v37
  %v92 = vunpack.c.l.b16 %v38
  %v93 = vunpack.c.h.b16 %v38
  %v94 = vunpack.c.l.b16 %v39
  %v95 = vunpack.c.h.b16 %v39
  %v96 = vunpack.c.l.b16 %v40
  %v97 = vunpack.c.h.b16 %v40
  %v98 = vunpack.c.l.b16 %v41
  %v99 = vunpack.c.h.b16 %v41
  %v100 = vunpack.c.l.b16 %v42
  %v101 = vunpack.c.h.b16 %v42
  %v102 = vunpack.c.l.b16 %v43
  %v103 = vunpack.c.h.b16 %v43
  %v104 = vpack.c.b16 %v74, %v72
  %v105 = vpack.c.b16 %v75, %v73
  %v106 = vpack.c.b16 %v78, %v76
  %v107 = vpack.c.b16 %v79, %v77
  %v108 = vpack.c.b16 %v82, %v80
  %v109 = vpack.c.b16 %v83, %v81
  %v110 = vpack.c.b16 %v86, %v84
  %v111 = vpack.c.b16 %v87, %v85
  %v112 = vpack.c.b16 %v90, %v88
  %v113 = vpack.c.b16 %v91, %v89
  %v114 = vpack.c.b16 %v94, %v92
  %v115 = vpack.c.b16 %v95, %v93
  %v116 = vpack.c.b16 %v98, %v96
  %v117 = vpack.c.b16 %v99, %v97
  %v118 = vpack.c.b16 %v102, %v100
  %v119 = vpack.c.b16 %v103, %v101
  %136 = vmatprep.subr.bf16.mxu0 %v105
  %137 = vmatpush1.bf16.msra.mxu0 %v104
  %138 = vmatprep.subr.bf16.mxu0 %v107
  %139 = vmatpush1.bf16.msra.mxu0 %v106
  %140 = vmatprep.subr.bf16.mxu0 %v109
  %141 = vmatpush1.bf16.msra.mxu0 %v108
  %142 = vmatprep.subr.bf16.mxu0 %v111
  %143 = vmatpush1.bf16.msra.mxu0 %v110
  %144 = vmatprep.subr.bf16.mxu0 %v113
  %145 = vmatpush1.bf16.msra.mxu0 %v112
  %146 = vmatprep.subr.bf16.mxu0 %v115
  %147 = vmatpush1.bf16.msra.mxu0 %v114
  %148 = vmatprep.subr.bf16.mxu0 %v117
  %149 = vmatpush1.bf16.msra.mxu0 %v116
  %150 = vmatprep.subr.bf16.mxu0 %v119
  %151 = vmatpush1.bf16.msra.mxu0 %v118
  %152 = vmatprep.subr.bf16.mxu0 0
  %153 = vmatpush1.bf16.msra.mxu0 0
  %154 = vmatprep.subr.bf16.mxu0 0
  %155 = vmatpush1.bf16.msra.mxu0 0
  %156 = vmatprep.subr.bf16.mxu0 0
  %157 = vmatpush1.bf16.msra.mxu0 0
  %158 = vmatprep.subr.bf16.mxu0 0
  %159 = vmatpush1.bf16.msra.mxu0 0
  %160 = vmatprep.subr.bf16.mxu0 0
  %161 = vmatpush1.bf16.msra.mxu0 0
  %162 = vmatprep.subr.bf16.mxu0 0
  %163 = vmatpush1.bf16.msra.mxu0 0
  %164 = vmatprep.subr.bf16.mxu0 0
  %165 = vmatpush1.bf16.msra.mxu0 0
  %166 = vmatprep.subr.bf16.mxu0 0
  %167 = vmatpush1.bf16.msra.mxu0 0
  %168 = vmatprep.mubr.bf16.mxu0 0
  %169 = vmatmul.mubr.bf16.gmra.mrb[0].mxu0 %v27
  %v170 = vpop.f32.mrb[0].mxu0
  %v171 = vadd.f32 %v49, %v170
  %v172 = vpop.f32.mrb[0].mxu0
  %v173 = vadd.f32 %v53, %v172
  %v174 = vpop.f32.mrb[0].mxu0
  %v175 = vpop.f32.mrb[0].mxu0
  %176 = vdwg.mxu0
  %v177 = vmax.f32 %v171, 0.0
  %v178 = vmax.f32 %v173, 0.0
  %v179 = vpack.c.bf16 %v177, %v177
  %v180 = vpack.c.bf16 %v178, %v178
  %v181 = vld [vmem:[%s3] sm:$0xff]
  %v182 = vld [vmem:[%s3 + $0x8] sm:$0xff]
  %v183 = vld [vmem:[%s3 + $0x10] sm:$0xff]
  %v184 = vld [vmem:[%s3 + $0x18] sm:$0xff]
  %v185 = vld [vmem:[%s3 + $0x20] sm:$0xff]
  %v186 = vld [vmem:[%s3 + $0x28] sm:$0xff]
  %v187 = vld [vmem:[%s3 + $0x30] sm:$0xff]
  %v188 = vld [vmem:[%s3 + $0x38] sm:$0xff]
  %v189 = vld [vmem:[%s3 + $0x40] sm:$0xff]
  %v190 = vld [vmem:[%s3 + $0x48] sm:$0xff]
  %v191 = vld [vmem:[%s3 + $0x50] sm:$0xff]
  %v192 = vld [vmem:[%s3 + $0x58] sm:$0xff]
  %v193 = vld [vmem:[%s3 + $0x60] sm:$0xff]
  %v194 = vld [vmem:[%s3 + $0x68] sm:$0xff]
  %v195 = vld [vmem:[%s3 + $0x70] sm:$0xff]
  %v196 = vld [vmem:[%s3 + $0x78] sm:$0xff]
  %v197 = vld [vmem:[%s3 + $0x80] sm:$0xff]
  %v198 = vld [vmem:[%s3 + $0x88] sm:$0xff]
  %v199 = vld [vmem:[%s3 + $0x90] sm:$0xff]
  %v200 = vld [vmem:[%s3 + $0x98] sm:$0xff]
  %v201 = vld [vmem:[%s3 + $0xa0] sm:$0xff]
  %v202 = vld [vmem:[%s3 + $0xa8] sm:$0xff]
  %v203 = vld [vmem:[%s3 + $0xb0] sm:$0xff]
  %v204 = vld [vmem:[%s3 + $0xb8] sm:$0xff]
  %v205 = vld [vmem:[%s3 + $0xc0] sm:$0xff]
  %v206 = vld [vmem:[%s3 + $0xc8] sm:$0xff]
  %v207 = vld [vmem:[%s3 + $0xd0] sm:$0xff]
  %v208 = vld [vmem:[%s3 + $0xd8] sm:$0xff]
  %v209 = vld [vmem:[%s3 + $0xe0] sm:$0xff]
  %v210 = vld [vmem:[%s3 + $0xe8] sm:$0xff]
  %v211 = vld [vmem:[%s3 + $0xf0] sm:$0xff]
  %v212 = vld [vmem:[%s3 + $0xf8] sm:$0xff]
  %v213 = vld [vmem:[%s3 + $0x100] sm:$0xff]
  %v214 = vld [vmem:[%s3 + $0x108] sm:$0xff]
  %v215 = vld [vmem:[%s3 + $0x110] sm:$0xff]
  %v216 = vld [vmem:[%s3 + $0x118] sm:$0xff]
  %v217 = vld [vmem:[%s3 + $0x120] sm:$0xff]
  %v218 = vld [vmem:[%s3 + $0x128] sm:$0xff]
  %v219 = vld [vmem:[%s3 + $0x130] sm:$0xff]
  %v220 = vld [vmem:[%s3 + $0x138] sm:$0xff]
  %v221 = vld [vmem:[%s3 + $0x140] sm:$0xff]
  %v222 = vld [vmem:[%s3 + $0x148] sm:$0xff]
  %v223 = vld [vmem:[%s3 + $0x150] sm:$0xff]
  %v224 = vld [vmem:[%s3 + $0x158] sm:$0xff]
  %v225 = vld [vmem:[%s3 + $0x160] sm:$0xff]
  %v226 = vld [vmem:[%s3 + $0x168] sm:$0xff]
  %v227 = vld [vmem:[%s3 + $0x170] sm:$0xff]
  %v228 = vld [vmem:[%s3 + $0x178] sm:$0xff]
  %v229 = vld [vmem:[%s3 + $0x180] sm:$0xff]
  %v230 = vld [vmem:[%s3 + $0x188] sm:$0xff]
  %v231 = vld [vmem:[%s3 + $0x190] sm:$0xff]
  %v232 = vld [vmem:[%s3 + $0x198] sm:$0xff]
  %v233 = vld [vmem:[%s3 + $0x1a0] sm:$0xff]
  %v234 = vld [vmem:[%s3 + $0x1a8] sm:$0xff]
  %v235 = vld [vmem:[%s3 + $0x1b0] sm:$0xff]
  %v236 = vld [vmem:[%s3 + $0x1b8] sm:$0xff]
  %v237 = vld [vmem:[%s3 + $0x1c0] sm:$0xff]
  %v238 = vld [vmem:[%s3 + $0x1c8] sm:$0xff]
  %v239 = vld [vmem:[%s3 + $0x1d0] sm:$0xff]
  %v240 = vld [vmem:[%s3 + $0x1d8] sm:$0xff]
  %v241 = vld [vmem:[%s3 + $0x1e0] sm:$0xff]
  %v242 = vld [vmem:[%s3 + $0x1e8] sm:$0xff]
  %v243 = vld [vmem:[%s3 + $0x1f0] sm:$0xff]
  %v244 = vld [vmem:[%s3 + $0x1f8] sm:$0xff]
  %v245 = vld [vmem:[%s4] sm:$0xf]
  %v247 = vlaneseq
  %v248 = vshrl.u32 %v247, 7
  %v249 = vsub.s32 0, %v248
  %v250 = vrot.slane %v245, %v249
  %v251 = vlaneseq
  %v252 = vshrl.u32 %v251, 7
  %v253 = vsub.s32 1, %v252
  %v254 = vrot.slane %v245, %v253
  %v255 = vlaneseq
  %v256 = vshrl.u32 %v255, 7
  %v257 = vsub.s32 2, %v256
  %v258 = vrot.slane %v245, %v257
  %v259 = vlaneseq
  %v260 = vshrl.u32 %v259, 7
  %v261 = vsub.s32 3, %v260
  %v262 = vrot.slane %v245, %v261
  %v331 = vunpack.c.l.b16 %v181
  %v332 = vunpack.c.h.b16 %v181
  %v333 = vunpack.c.l.b16 %v182
  %v334 = vunpack.c.h.b16 %v182
  %v335 = vunpack.c.l.b16 %v183
  %v336 = vunpack.c.h.b16 %v183
  %v337 = vunpack.c.l.b16 %v184
  %v338 = vunpack.c.h.b16 %v184
  %v339 = vunpack.c.l.b16 %v185
  %v340 = vunpack.c.h.b16 %v185
  %v341 = vunpack.c.l.b16 %v186
  %v342 = vunpack.c.h.b16 %v186
  %v343 = vunpack.c.l.b16 %v187
  %v344 = vunpack.c.h.b16 %v187
  %v345 = vunpack.c.l.b16 %v188
  %v346 = vunpack.c.h.b16 %v188
  %v347 = vunpack.c.l.b16 %v189
  %v348 = vunpack.c.h.b16 %v189
  %v349 = vunpack.c.l.b16 %v190
  %v350 = vunpack.c.h.b16 %v190
  %v351 = vunpack.c.l.b16 %v191
  %v352 = vunpack.c.h.b16 %v191
  %v353 = vunpack.c.l.b16 %v192
  %v354 = vunpack.c.h.b16 %v192
  %v355 = vunpack.c.l.b16 %v193
  %v356 = vunpack.c.h.b16 %v193
  %v357 = vunpack.c.l.b16 %v194
  %v358 = vunpack.c.h.b16 %v194
  %v359 = vunpack.c.l.b16 %v195
  %v360 = vunpack.c.h.b16 %v195
  %v361 = vunpack.c.l.b16 %v196
  %v362 = vunpack.c.h.b16 %v196
  %v363 = vunpack.c.l.b16 %v197
  %v364 = vunpack.c.h.b16 %v197
  %v365 = vunpack.c.l.b16 %v198
  %v366 = vunpack.c.h.b16 %v198
  %v367 = vunpack.c.l.b16 %v199
  %v368 = vunpack.c.h.b16 %v199
  %v369 = vunpack.c.l.b16 %v200
  %v370 = vunpack.c.h.b16 %v200
  %v371 = vunpack.c.l.b16 %v201
  %v372 = vunpack.c.h.b16 %v201
  %v373 = vunpack.c.l.b16 %v202
  %v374 = vunpack.c.h.b16 %v202
  %v375 = vunpack.c.l.b16 %v203
  %v376 = vunpack.c.h.b16 %v203
  %v377 = vunpack.c.l.b16 %v204
  %v378 = vunpack.c.h.b16 %v204
  %v379 = vunpack.c.l.b16 %v205
  %v380 = vunpack.c.h.b16 %v205
  %v381 = vunpack.c.l.b16 %v206
  %v382 = vunpack.c.h.b16 %v206
  %v383 = vunpack.c.l.b16 %v207
  %v384 = vunpack.c.h.b16 %v207
  %v385 = vunpack.c.l.b16 %v208
  %v386 = vunpack.c.h.b16 %v208
  %v387 = vunpack.c.l.b16 %v209
  %v388 = vunpack.c.h.b16 %v209
  %v389 = vunpack.c.l.b16 %v210
  %v390 = vunpack.c.h.b16 %v210
  %v391 = vunpack.c.l.b16 %v211
  %v392 = vunpack.c.h.b16 %v211
  %v393 = vunpack.c.l.b16 %v212
  %v394 = vunpack.c.h.b16 %v212
  %v395 = vunpack.c.l.b16 %v213
  %v396 = vunpack.c.h.b16 %v213
  %v397 = vunpack.c.l.b16 %v214
  %v398 = vunpack.c.h.b16 %v214
  %v399 = vunpack.c.l.b16 %v215
  %v400 = vunpack.c.h.b16 %v215
  %v401 = vunpack.c.l.b16 %v216
  %v402 = vunpack.c.h.b16 %v216
  %v403 = vunpack.c.l.b16 %v217
  %v404 = vunpack.c.h.b16 %v217
  %v405 = vunpack.c.l.b16 %v218
  %v406 = vunpack.c.h.b16 %v218
  %v407 = vunpack.c.l.b16 %v219
  %v408 = vunpack.c.h.b16 %v219
  %v409 = vunpack.c.l.b16 %v220
  %v410 = vunpack.c.h.b16 %v220
  %v411 = vunpack.c.l.b16 %v221
  %v412 = vunpack.c.h.b16 %v221
  %v413 = vunpack.c.l.b16 %v222
  %v414 = vunpack.c.h.b16 %v222
  %v415 = vunpack.c.l.b16 %v223
  %v416 = vunpack.c.h.b16 %v223
  %v417 = vunpack.c.l.b16 %v224
  %v418 = vunpack.c.h.b16 %v224
  %v419 = vunpack.c.l.b16 %v225
  %v420 = vunpack.c.h.b16 %v225
  %v421 = vunpack.c.l.b16 %v226
  %v422 = vunpack.c.h.b16 %v226
  %v423 = vunpack.c.l.b16 %v227
  %v424 = vunpack.c.h.b16 %v227
  %v425 = vunpack.c.l.b16 %v228
  %v426 = vunpack.c.h.b16 %v228
  %v427 = vunpack.c.l.b16 %v229
  %v428 = vunpack.c.h.b16 %v229
  %v429 = vunpack.c.l.b16 %v230
  %v430 = vunpack.c.h.b16 %v230
  %v431 = vunpack.c.l.b16 %v231
  %v432 = vunpack.c.h.b16 %v231
  %v433 = vunpack.c.l.b16 %v232
  %v434 = vunpack.c.h.b16 %v232
  %v435 = vunpack.c.l.b16 %v233
  %v436 = vunpack.c.h.b16 %v233
  %v437 = vunpack.c.l.b16 %v234
  %v438 = vunpack.c.h.b16 %v234
  %v439 = vunpack.c.l.b16 %v235
  %v440 = vunpack.c.h.b16 %v235
  %v441 = vunpack.c.l.b16 %v236
  %v442 = vunpack.c.h.b16 %v236
  %v443 = vunpack.c.l.b16 %v237
  %v444 = vunpack.c.h.b16 %v237
  %v445 = vunpack.c.l.b16 %v238
  %v446 = vunpack.c.h.b16 %v238
  %v447 = vunpack.c.l.b16 %v239
  %v448 = vunpack.c.h.b16 %v239
  %v449 = vunpack.c.l.b16 %v240
  %v450 = vunpack.c.h.b16 %v240
  %v451 = vunpack.c.l.b16 %v241
  %v452 = vunpack.c.h.b16 %v241
  %v453 = vunpack.c.l.b16 %v242
  %v454 = vunpack.c.h.b16 %v242
  %v455 = vunpack.c.l.b16 %v243
  %v456 = vunpack.c.h.b16 %v243
  %v457 = vunpack.c.l.b16 %v244
  %v458 = vunpack.c.h.b16 %v244
  %v459 = vpack.c.b16 %v335, %v331
  %v460 = vpack.c.b16 %v336, %v332
  %v461 = vpack.c.b16 %v337, %v333
  %v462 = vpack.c.b16 %v338, %v334
  %v463 = vpack.c.b16 %v343, %v339
  %v464 = vpack.c.b16 %v344, %v340
  %v465 = vpack.c.b16 %v345, %v341
  %v466 = vpack.c.b16 %v346, %v342
  %v467 = vpack.c.b16 %v351, %v347
  %v468 = vpack.c.b16 %v352, %v348
  %v469 = vpack.c.b16 %v353, %v349
  %v470 = vpack.c.b16 %v354, %v350
  %v471 = vpack.c.b16 %v359, %v355
  %v472 = vpack.c.b16 %v360, %v356
  %v473 = vpack.c.b16 %v361, %v357
  %v474 = vpack.c.b16 %v362, %v358
  %v475 = vpack.c.b16 %v367, %v363
  %v476 = vpack.c.b16 %v368, %v364
  %v477 = vpack.c.b16 %v369, %v365
  %v478 = vpack.c.b16 %v370, %v366
  %v479 = vpack.c.b16 %v375, %v371
  %v480 = vpack.c.b16 %v376, %v372
  %v481 = vpack.c.b16 %v377, %v373
  %v482 = vpack.c.b16 %v378, %v374
  %v483 = vpack.c.b16 %v383, %v379
  %v484 = vpack.c.b16 %v384, %v380
  %v485 = vpack.c.b16 %v385, %v381
  %v486 = vpack.c.b16 %v386, %v382
  %v487 = vpack.c.b16 %v391, %v387
  %v488 = vpack.c.b16 %v392, %v388
  %v489 = vpack.c.b16 %v393, %v389
  %v490 = vpack.c.b16 %v394, %v390
  %v491 = vpack.c.b16 %v399, %v395
  %v492 = vpack.c.b16 %v400, %v396
  %v493 = vpack.c.b16 %v401, %v397
  %v494 = vpack.c.b16 %v402, %v398
  %v495 = vpack.c.b16 %v407, %v403
  %v496 = vpack.c.b16 %v408, %v404
  %v497 = vpack.c.b16 %v409, %v405
  %v498 = vpack.c.b16 %v410, %v406
  %v499 = vpack.c.b16 %v415, %v411
  %v500 = vpack.c.b16 %v416, %v412
  %v501 = vpack.c.b16 %v417, %v413
  %v502 = vpack.c.b16 %v418, %v414
  %v503 = vpack.c.b16 %v423, %v419
  %v504 = vpack.c.b16 %v424, %v420
  %v505 = vpack.c.b16 %v425, %v421
  %v506 = vpack.c.b16 %v426, %v422
  %v507 = vpack.c.b16 %v431, %v427
  %v508 = vpack.c.b16 %v432, %v428
  %v509 = vpack.c.b16 %v433, %v429
  %v510 = vpack.c.b16 %v434, %v430
  %v511 = vpack.c.b16 %v439, %v435
  %v512 = vpack.c.b16 %v440, %v436
  %v513 = vpack.c.b16 %v441, %v437
  %v514 = vpack.c.b16 %v442, %v438
  %v515 = vpack.c.b16 %v447, %v443
  %v516 = vpack.c.b16 %v448, %v444
  %v517 = vpack.c.b16 %v449, %v445
  %v518 = vpack.c.b16 %v450, %v446
  %v519 = vpack.c.b16 %v455, %v451
  %v520 = vpack.c.b16 %v456, %v452
  %v521 = vpack.c.b16 %v457, %v453
  %v522 = vpack.c.b16 %v458, %v454
  %587 = vmatprep.subr.bf16.mxu0 %v460
  %588 = vmatpush1.bf16.msra.mxu0 %v459
  %589 = vmatprep.subr.bf16.mxu0 %v464
  %590 = vmatpush1.bf16.msra.mxu0 %v463
  %591 = vmatprep.subr.bf16.mxu0 %v468
  %592 = vmatpush1.bf16.msra.mxu0 %v467
  %593 = vmatprep.subr.bf16.mxu0 %v472
  %594 = vmatpush1.bf16.msra.mxu0 %v471
  %595 = vmatprep.subr.bf16.mxu0 %v476
  %596 = vmatpush1.bf16.msra.mxu0 %v475
  %597 = vmatprep.subr.bf16.mxu0 %v480
  %598 = vmatpush1.bf16.msra.mxu0 %v479
  %599 = vmatprep.subr.bf16.mxu0 %v484
  %600 = vmatpush1.bf16.msra.mxu0 %v483
  %601 = vmatprep.subr.bf16.mxu0 %v488
  %602 = vmatpush1.bf16.msra.mxu0 %v487
  %603 = vmatprep.subr.bf16.mxu0 %v492
  %604 = vmatpush1.bf16.msra.mxu0 %v491
  %605 = vmatprep.subr.bf16.mxu0 %v496
  %606 = vmatpush1.bf16.msra.mxu0 %v495
  %607 = vmatprep.subr.bf16.mxu0 %v500
  %608 = vmatpush1.bf16.msra.mxu0 %v499
  %609 = vmatprep.subr.bf16.mxu0 %v504
  %610 = vmatpush1.bf16.msra.mxu0 %v503
  %611 = vmatprep.subr.bf16.mxu0 %v508
  %612 = vmatpush1.bf16.msra.mxu0 %v507
  %613 = vmatprep.subr.bf16.mxu0 %v512
  %614 = vmatpush1.bf16.msra.mxu0 %v511
  %615 = vmatprep.subr.bf16.mxu0 %v516
  %616 = vmatpush1.bf16.msra.mxu0 %v515
  %617 = vmatprep.subr.bf16.mxu0 %v520
  %618 = vmatpush1.bf16.msra.mxu0 %v519
  %619 = vmatprep.mubr.bf16.mxu0 %v180
  %620 = vmatmul.mubr.bf16.gmra.mrb[0].mxu0 %v179
  %v621 = vpop.f32.mrb[0].mxu0
  %v622 = vadd.f32 %v250, %v621
  %v623 = vpop.f32.mrb[0].mxu0
  %v624 = vadd.f32 %v254, %v623
  %v625 = vpop.f32.mrb[0].mxu0
  %v626 = vpop.f32.mrb[0].mxu0
  %627 = vdwg.mxu0
  %628 = vmatprep.subr.bf16.mxu0 %v462
  %629 = vmatpush1.bf16.msra.mxu0 %v461
  %630 = vmatprep.subr.bf16.mxu0 %v466
  %631 = vmatpush1.bf16.msra.mxu0 %v465
  %632 = vmatprep.subr.bf16.mxu0 %v470
  %633 = vmatpush1.bf16.msra.mxu0 %v469
  %634 = vmatprep.subr.bf16.mxu0 %v474
  %635 = vmatpush1.bf16.msra.mxu0 %v473
  %636 = vmatprep.subr.bf16.mxu0 %v478
  %637 = vmatpush1.bf16.msra.mxu0 %v477
  %638 = vmatprep.subr.bf16.mxu0 %v482
  %639 = vmatpush1.bf16.msra.mxu0 %v481
  %640 = vmatprep.subr.bf16.mxu0 %v486
  %641 = vmatpush1.bf16.msra.mxu0 %v485
  %642 = vmatprep.subr.bf16.mxu0 %v490
  %643 = vmatpush1.bf16.msra.mxu0 %v489
  %644 = vmatprep.subr.bf16.mxu0 %v494
  %645 = vmatpush1.bf16.msra.mxu0 %v493
  %646 = vmatprep.subr.bf16.mxu0 %v498
  %647 = vmatpush1.bf16.msra.mxu0 %v497
  %648 = vmatprep.subr.bf16.mxu0 %v502
  %649 = vmatpush1.bf16.msra.mxu0 %v501
  %650 = vmatprep.subr.bf16.mxu0 %v506
  %651 = vmatpush1.bf16.msra.mxu0 %v505
  %652 = vmatprep.subr.bf16.mxu0 %v510
  %653 = vmatpush1.bf16.msra.mxu0 %v509
  %654 = vmatprep.subr.bf16.mxu0 %v514
  %655 = vmatpush1.bf16.msra.mxu0 %v513
  %656 = vmatprep.subr.bf16.mxu0 %v518
  %657 = vmatpush1.bf16.msra.mxu0 %v517
  %658 = vmatprep.subr.bf16.mxu0 %v522
  %659 = vmatpush1.bf16.msra.mxu0 %v521
  %660 = vmatprep.mubr.bf16.mxu0 %v180
  %661 = vmatmul.mubr.bf16.gmra.mrb[0].mxu0 %v179
  %v662 = vpop.f32.mrb[0].mxu0
  %v663 = vadd.f32 %v258, %v662
  %v664 = vpop.f32.mrb[0].mxu0
  %v665 = vadd.f32 %v262, %v664
  %v666 = vpop.f32.mrb[0].mxu0
  %v667 = vpop.f32.mrb[0].mxu0
  %668 = vdwg.mxu0
  %v669 = vmax.f32 %v622, 0.0
  %v670 = vmax.f32 %v624, 0.0
  %v671 = vmax.f32 %v663, 0.0
  %v672 = vmax.f32 %v665, 0.0
  %v673 = vpack.c.bf16 %v669, %v669
  %v674 = vpack.c.bf16 %v670, %v670
  %v675 = vpack.c.bf16 %v671, %v671
  %v676 = vpack.c.bf16 %v672, %v672
  %v677 = vld [vmem:[%s5] sm:$0xff]
  %v678 = vld [vmem:[%s5 + $0x8] sm:$0xff]
  %v679 = vld [vmem:[%s5 + $0x10] sm:$0xff]
  %v680 = vld [vmem:[%s5 + $0x18] sm:$0xf]
  %v681 = vld [vmem:[%s5 + $0x1c] sm:$0xff]
  %v682 = vld [vmem:[%s5 + $0x24] sm:$0xff]
  %v683 = vld [vmem:[%s5 + $0x2c] sm:$0xff]
  %v684 = vld [vmem:[%s5 + $0x34] sm:$0xf]
  %v685 = vld [vmem:[%s5 + $0x38] sm:$0xff]
  %v686 = vld [vmem:[%s5 + $0x40] sm:$0xff]
  %v687 = vld [vmem:[%s5 + $0x48] sm:$0xff]
  %v688 = vld [vmem:[%s5 + $0x50] sm:$0xf]
  %v689 = vld [vmem:[%s5 + $0x54] sm:$0xff]
  %v690 = vld [vmem:[%s5 + $0x5c] sm:$0xff]
  %v691 = vld [vmem:[%s5 + $0x64] sm:$0xff]
  %v692 = vld [vmem:[%s5 + $0x6c] sm:$0xf]
  %v693 = vld [vmem:[%s5 + $0x70] sm:$0xff]
  %v694 = vld [vmem:[%s5 + $0x78] sm:$0xff]
  %v695 = vld [vmem:[%s5 + $0x80] sm:$0xff]
  %v696 = vld [vmem:[%s5 + $0x88] sm:$0xf]
  %v697 = vld [vmem:[%s5 + $0x8c] sm:$0xff]
  %v698 = vld [vmem:[%s5 + $0x94] sm:$0xff]
  %v699 = vld [vmem:[%s5 + $0x9c] sm:$0xff]
  %v700 = vld [vmem:[%s5 + $0xa4] sm:$0xf]
  %v701 = vld [vmem:[%s5 + $0xa8] sm:$0xff]
  %v702 = vld [vmem:[%s5 + $0xb0] sm:$0xff]
  %v703 = vld [vmem:[%s5 + $0xb8] sm:$0xff]
  %v704 = vld [vmem:[%s5 + $0xc0] sm:$0xf]
  %v705 = vld [vmem:[%s5 + $0xc4] sm:$0xff]
  %v706 = vld [vmem:[%s5 + $0xcc] sm:$0xff]
  %v707 = vld [vmem:[%s5 + $0xd4] sm:$0xff]
  %v708 = vld [vmem:[%s5 + $0xdc] sm:$0xf]
  %v709 = vld [vmem:[%s5 + $0xe0] sm:$0xff]
  %v710 = vld [vmem:[%s5 + $0xe8] sm:$0xff]
  %v711 = vld [vmem:[%s5 + $0xf0] sm:$0xff]
  %v712 = vld [vmem:[%s5 + $0xf8] sm:$0xf]
  %v713 = vld [vmem:[%s5 + $0xfc] sm:$0xff]
  %v714 = vld [vmem:[%s5 + $0x104] sm:$0xff]
  %v715 = vld [vmem:[%s5 + $0x10c] sm:$0xff]
  %v716 = vld [vmem:[%s5 + $0x114] sm:$0xf]
  %v717 = vld [vmem:[%s5 + $0x118] sm:$0xff]
  %v718 = vld [vmem:[%s5 + $0x120] sm:$0xff]
  %v719 = vld [vmem:[%s5 + $0x128] sm:$0xff]
  %v720 = vld [vmem:[%s5 + $0x130] sm:$0xf]
  %v721 = vld [vmem:[%s5 + $0x134] sm:$0xff]
  %v722 = vld [vmem:[%s5 + $0x13c] sm:$0xff]
  %v723 = vld [vmem:[%s5 + $0x144] sm:$0xff]
  %v724 = vld [vmem:[%s5 + $0x14c] sm:$0xf]
  %v725 = vld [vmem:[%s5 + $0x150] sm:$0xff]
  %v726 = vld [vmem:[%s5 + $0x158] sm:$0xff]
  %v727 = vld [vmem:[%s5 + $0x160] sm:$0xff]
  %v728 = vld [vmem:[%s5 + $0x168] sm:$0xf]
  %v729 = vld [vmem:[%s5 + $0x16c] sm:$0xff]
  %v730 = vld [vmem:[%s5 + $0x174] sm:$0xff]
  %v731 = vld [vmem:[%s5 + $0x17c] sm:$0xff]
  %v732 = vld [vmem:[%s5 + $0x184] sm:$0xf]
  %v733 = vld [vmem:[%s5 + $0x188] sm:$0xff]
  %v734 = vld [vmem:[%s5 + $0x190] sm:$0xff]
  %v735 = vld [vmem:[%s5 + $0x198] sm:$0xff]
  %v736 = vld [vmem:[%s5 + $0x1a0] sm:$0xf]
  %v737 = vld [vmem:[%s5 + $0x1a4] sm:$0xff]
  %v738 = vld [vmem:[%s5 + $0x1ac] sm:$0xff]
  %v739 = vld [vmem:[%s5 + $0x1b4] sm:$0xff]
  %v740 = vld [vmem:[%s5 + $0x1bc] sm:$0xf]
  %v741 = vld [vmem:[%s5 + $0x1c0] sm:$0xff]
  %v742 = vld [vmem:[%s5 + $0x1c8] sm:$0xff]
  %v743 = vld [vmem:[%s5 + $0x1d0] sm:$0xff]
  %v744 = vld [vmem:[%s5 + $0x1d8] sm:$0xf]
  %v745 = vld [vmem:[%s5 + $0x1dc] sm:$0xff]
  %v746 = vld [vmem:[%s5 + $0x1e4] sm:$0xff]
  %v747 = vld [vmem:[%s5 + $0x1ec] sm:$0xff]
  %v748 = vld [vmem:[%s5 + $0x1f4] sm:$0xf]
  %v749 = vld [vmem:[%s5 + $0x1f8] sm:$0xff]
  %v750 = vld [vmem:[%s5 + $0x200] sm:$0xff]
  %v751 = vld [vmem:[%s5 + $0x208] sm:$0xff]
  %v752 = vld [vmem:[%s5 + $0x210] sm:$0xf]
  %v753 = vld [vmem:[%s5 + $0x214] sm:$0xff]
  %v754 = vld [vmem:[%s5 + $0x21c] sm:$0xff]
  %v755 = vld [vmem:[%s5 + $0x224] sm:$0xff]
  %v756 = vld [vmem:[%s5 + $0x22c] sm:$0xf]
  %v757 = vld [vmem:[%s5 + $0x230] sm:$0xff]
  %v758 = vld [vmem:[%s5 + $0x238] sm:$0xff]
  %v759 = vld [vmem:[%s5 + $0x240] sm:$0xff]
  %v760 = vld [vmem:[%s5 + $0x248] sm:$0xf]
  %v761 = vld [vmem:[%s5 + $0x24c] sm:$0xff]
  %v762 = vld [vmem:[%s5 + $0x254] sm:$0xff]
  %v763 = vld [vmem:[%s5 + $0x25c] sm:$0xff]
  %v764 = vld [vmem:[%s5 + $0x264] sm:$0xf]
  %v765 = vld [vmem:[%s5 + $0x268] sm:$0xff]
  %v766 = vld [vmem:[%s5 + $0x270] sm:$0xff]
  %v767 = vld [vmem:[%s5 + $0x278] sm:$0xff]
  %v768 = vld [vmem:[%s5 + $0x280] sm:$0xf]
  %v769 = vld [vmem:[%s5 + $0x284] sm:$0xff]
  %v770 = vld [vmem:[%s5 + $0x28c] sm:$0xff]
  %v771 = vld [vmem:[%s5 + $0x294] sm:$0xff]
  %v772 = vld [vmem:[%s5 + $0x29c] sm:$0xf]
  %v773 = vld [vmem:[%s5 + $0x2a0] sm:$0xff]
  %v774 = vld [vmem:[%s5 + $0x2a8] sm:$0xff]
  %v775 = vld [vmem:[%s5 + $0x2b0] sm:$0xff]
  %v776 = vld [vmem:[%s5 + $0x2b8] sm:$0xf]
  %v777 = vld [vmem:[%s5 + $0x2bc] sm:$0xff]
  %v778 = vld [vmem:[%s5 + $0x2c4] sm:$0xff]
  %v779 = vld [vmem:[%s5 + $0x2cc] sm:$0xff]
  %v780 = vld [vmem:[%s5 + $0x2d4] sm:$0xf]
  %v781 = vld [vmem:[%s5 + $0x2d8] sm:$0xff]
  %v782 = vld [vmem:[%s5 + $0x2e0] sm:$0xff]
  %v783 = vld [vmem:[%s5 + $0x2e8] sm:$0xff]
  %v784 = vld [vmem:[%s5 + $0x2f0] sm:$0xf]
  %v785 = vld [vmem:[%s5 + $0x2f4] sm:$0xff]
  %v786 = vld [vmem:[%s5 + $0x2fc] sm:$0xff]
  %v787 = vld [vmem:[%s5 + $0x304] sm:$0xff]
  %v788 = vld [vmem:[%s5 + $0x30c] sm:$0xf]
  %v789 = vld [vmem:[%s5 + $0x310] sm:$0xff]
  %v790 = vld [vmem:[%s5 + $0x318] sm:$0xff]
  %v791 = vld [vmem:[%s5 + $0x320] sm:$0xff]
  %v792 = vld [vmem:[%s5 + $0x328] sm:$0xf]
  %v793 = vld [vmem:[%s5 + $0x32c] sm:$0xff]
  %v794 = vld [vmem:[%s5 + $0x334] sm:$0xff]
  %v795 = vld [vmem:[%s5 + $0x33c] sm:$0xff]
  %v796 = vld [vmem:[%s5 + $0x344] sm:$0xf]
  %v797 = vld [vmem:[%s5 + $0x348] sm:$0xff]
  %v798 = vld [vmem:[%s5 + $0x350] sm:$0xff]
  %v799 = vld [vmem:[%s5 + $0x358] sm:$0xff]
  %v800 = vld [vmem:[%s5 + $0x360] sm:$0xf]
  %v801 = vld [vmem:[%s5 + $0x364] sm:$0xff]
  %v802 = vld [vmem:[%s5 + $0x36c] sm:$0xff]
  %v803 = vld [vmem:[%s5 + $0x374] sm:$0xff]
  %v804 = vld [vmem:[%s5 + $0x37c] sm:$0xf]
  %v805 = vld [vmem:[%s5 + $0x380] sm:$0xff]
  %v806 = vld [vmem:[%s5 + $0x388] sm:$0xff]
  %v807 = vld [vmem:[%s5 + $0x390] sm:$0xff]
  %v808 = vld [vmem:[%s5 + $0x398] sm:$0xf]
  %v809 = vld [vmem:[%s5 + $0x39c] sm:$0xff]
  %v810 = vld [vmem:[%s5 + $0x3a4] sm:$0xff]
  %v811 = vld [vmem:[%s5 + $0x3ac] sm:$0xff]
  %v812 = vld [vmem:[%s5 + $0x3b4] sm:$0xf]
  %v813 = vld [vmem:[%s5 + $0x3b8] sm:$0xff]
  %v814 = vld [vmem:[%s5 + $0x3c0] sm:$0xff]
  %v815 = vld [vmem:[%s5 + $0x3c8] sm:$0xff]
  %v816 = vld [vmem:[%s5 + $0x3d0] sm:$0xf]
  %v817 = vld [vmem:[%s5 + $0x3d4] sm:$0xff]
  %v818 = vld [vmem:[%s5 + $0x3dc] sm:$0xff]
  %v819 = vld [vmem:[%s5 + $0x3e4] sm:$0xff]
  %v820 = vld [vmem:[%s5 + $0x3ec] sm:$0xf]
  %v821 = vld [vmem:[%s5 + $0x3f0] sm:$0xff]
  %v822 = vld [vmem:[%s5 + $0x3f8] sm:$0xff]
  %v823 = vld [vmem:[%s5 + $0x400] sm:$0xff]
  %v824 = vld [vmem:[%s5 + $0x408] sm:$0xf]
  %v825 = vld [vmem:[%s5 + $0x40c] sm:$0xff]
  %v826 = vld [vmem:[%s5 + $0x414] sm:$0xff]
  %v827 = vld [vmem:[%s5 + $0x41c] sm:$0xff]
  %v828 = vld [vmem:[%s5 + $0x424] sm:$0xf]
  %v829 = vld [vmem:[%s5 + $0x428] sm:$0xff]
  %v830 = vld [vmem:[%s5 + $0x430] sm:$0xff]
  %v831 = vld [vmem:[%s5 + $0x438] sm:$0xff]
  %v832 = vld [vmem:[%s5 + $0x440] sm:$0xf]
  %v833 = vld [vmem:[%s5 + $0x444] sm:$0xff]
  %v834 = vld [vmem:[%s5 + $0x44c] sm:$0xff]
  %v835 = vld [vmem:[%s5 + $0x454] sm:$0xff]
  %v836 = vld [vmem:[%s5 + $0x45c] sm:$0xf]
  %v837 = vld [vmem:[%s5 + $0x460] sm:$0xff]
  %v838 = vld [vmem:[%s5 + $0x468] sm:$0xff]
  %v839 = vld [vmem:[%s5 + $0x470] sm:$0xff]
  %v840 = vld [vmem:[%s5 + $0x478] sm:$0xf]
  %v841 = vld [vmem:[%s5 + $0x47c] sm:$0xff]
  %v842 = vld [vmem:[%s5 + $0x484] sm:$0xff]
  %v843 = vld [vmem:[%s5 + $0x48c] sm:$0xff]
  %v844 = vld [vmem:[%s5 + $0x494] sm:$0xf]
  %v845 = vld [vmem:[%s5 + $0x498] sm:$0xff]
  %v846 = vld [vmem:[%s5 + $0x4a0] sm:$0xff]
  %v847 = vld [vmem:[%s5 + $0x4a8] sm:$0xff]
  %v848 = vld [vmem:[%s5 + $0x4b0] sm:$0xf]
  %v849 = vld [vmem:[%s5 + $0x4b4] sm:$0xff]
  %v850 = vld [vmem:[%s5 + $0x4bc] sm:$0xff]
  %v851 = vld [vmem:[%s5 + $0x4c4] sm:$0xff]
  %v852 = vld [vmem:[%s5 + $0x4cc] sm:$0xf]
  %v853 = vld [vmem:[%s5 + $0x4d0] sm:$0xff]
  %v854 = vld [vmem:[%s5 + $0x4d8] sm:$0xff]
  %v855 = vld [vmem:[%s5 + $0x4e0] sm:$0xff]
  %v856 = vld [vmem:[%s5 + $0x4e8] sm:$0xf]
  %v857 = vld [vmem:[%s5 + $0x4ec] sm:$0xff]
  %v858 = vld [vmem:[%s5 + $0x4f4] sm:$0xff]
  %v859 = vld [vmem:[%s5 + $0x4fc] sm:$0xff]
  %v860 = vld [vmem:[%s5 + $0x504] sm:$0xf]
  %v861 = vld [vmem:[%s5 + $0x508] sm:$0xff]
  %v862 = vld [vmem:[%s5 + $0x510] sm:$0xff]
  %v863 = vld [vmem:[%s5 + $0x518] sm:$0xff]
  %v864 = vld [vmem:[%s5 + $0x520] sm:$0xf]
  %v865 = vld [vmem:[%s5 + $0x524] sm:$0xff]
  %v866 = vld [vmem:[%s5 + $0x52c] sm:$0xff]
  %v867 = vld [vmem:[%s5 + $0x534] sm:$0xff]
  %v868 = vld [vmem:[%s5 + $0x53c] sm:$0xf]
  %v869 = vld [vmem:[%s5 + $0x540] sm:$0xff]
  %v870 = vld [vmem:[%s5 + $0x548] sm:$0xff]
  %v871 = vld [vmem:[%s5 + $0x550] sm:$0xff]
  %v872 = vld [vmem:[%s5 + $0x558] sm:$0xf]
  %v873 = vld [vmem:[%s5 + $0x55c] sm:$0xff]
  %v874 = vld [vmem:[%s5 + $0x564] sm:$0xff]
  %v875 = vld [vmem:[%s5 + $0x56c] sm:$0xff]
  %v876 = vld [vmem:[%s5 + $0x574] sm:$0xf]
  %v877 = vld [vmem:[%s5 + $0x578] sm:$0xff]
  %v878 = vld [vmem:[%s5 + $0x580] sm:$0xff]
  %v879 = vld [vmem:[%s5 + $0x588] sm:$0xff]
  %v880 = vld [vmem:[%s5 + $0x590] sm:$0xf]
  %v881 = vld [vmem:[%s5 + $0x594] sm:$0xff]
  %v882 = vld [vmem:[%s5 + $0x59c] sm:$0xff]
  %v883 = vld [vmem:[%s5 + $0x5a4] sm:$0xff]
  %v884 = vld [vmem:[%s5 + $0x5ac] sm:$0xf]
  %v885 = vld [vmem:[%s5 + $0x5b0] sm:$0xff]
  %v886 = vld [vmem:[%s5 + $0x5b8] sm:$0xff]
  %v887 = vld [vmem:[%s5 + $0x5c0] sm:$0xff]
  %v888 = vld [vmem:[%s5 + $0x5c8] sm:$0xf]
  %v889 = vld [vmem:[%s5 + $0x5cc] sm:$0xff]
  %v890 = vld [vmem:[%s5 + $0x5d4] sm:$0xff]
  %v891 = vld [vmem:[%s5 + $0x5dc] sm:$0xff]
  %v892 = vld [vmem:[%s5 + $0x5e4] sm:$0xf]
  %v893 = vld [vmem:[%s5 + $0x5e8] sm:$0xff]
  %v894 = vld [vmem:[%s5 + $0x5f0] sm:$0xff]
  %v895 = vld [vmem:[%s5 + $0x5f8] sm:$0xff]
  %v896 = vld [vmem:[%s5 + $0x600] sm:$0xf]
  %v897 = vld [vmem:[%s5 + $0x604] sm:$0xff]
  %v898 = vld [vmem:[%s5 + $0x60c] sm:$0xff]
  %v899 = vld [vmem:[%s5 + $0x614] sm:$0xff]
  %v900 = vld [vmem:[%s5 + $0x61c] sm:$0xf]
  %v901 = vld [vmem:[%s5 + $0x620] sm:$0xff]
  %v902 = vld [vmem:[%s5 + $0x628] sm:$0xff]
  %v903 = vld [vmem:[%s5 + $0x630] sm:$0xff]
  %v904 = vld [vmem:[%s5 + $0x638] sm:$0xf]
  %v905 = vld [vmem:[%s5 + $0x63c] sm:$0xff]
  %v906 = vld [vmem:[%s5 + $0x644] sm:$0xff]
  %v907 = vld [vmem:[%s5 + $0x64c] sm:$0xff]
  %v908 = vld [vmem:[%s5 + $0x654] sm:$0xf]
  %v909 = vld [vmem:[%s5 + $0x658] sm:$0xff]
  %v910 = vld [vmem:[%s5 + $0x660] sm:$0xff]
  %v911 = vld [vmem:[%s5 + $0x668] sm:$0xff]
  %v912 = vld [vmem:[%s5 + $0x670] sm:$0xf]
  %v913 = vld [vmem:[%s5 + $0x674] sm:$0xff]
  %v914 = vld [vmem:[%s5 + $0x67c] sm:$0xff]
  %v915 = vld [vmem:[%s5 + $0x684] sm:$0xff]
  %v916 = vld [vmem:[%s5 + $0x68c] sm:$0xf]
  %v917 = vld [vmem:[%s5 + $0x690] sm:$0xff]
  %v918 = vld [vmem:[%s5 + $0x698] sm:$0xff]
  %v919 = vld [vmem:[%s5 + $0x6a0] sm:$0xff]
  %v920 = vld [vmem:[%s5 + $0x6a8] sm:$0xf]
  %v921 = vld [vmem:[%s5 + $0x6ac] sm:$0xff]
  %v922 = vld [vmem:[%s5 + $0x6b4] sm:$0xff]
  %v923 = vld [vmem:[%s5 + $0x6bc] sm:$0xff]
  %v924 = vld [vmem:[%s5 + $0x6c4] sm:$0xf]
  %v925 = vld [vmem:[%s5 + $0x6c8] sm:$0xff]
  %v926 = vld [vmem:[%s5 + $0x6d0] sm:$0xff]
  %v927 = vld [vmem:[%s5 + $0x6d8] sm:$0xff]
  %v928 = vld [vmem:[%s5 + $0x6e0] sm:$0xf]
  %v929 = vld [vmem:[%s5 + $0x6e4] sm:$0xff]
  %v930 = vld [vmem:[%s5 + $0x6ec] sm:$0xff]
  %v931 = vld [vmem:[%s5 + $0x6f4] sm:$0xff]
  %v932 = vld [vmem:[%s5 + $0x6fc] sm:$0xf]
  %v933 = vld [vmem:[%s6] sm:$0xff]
  %v935 = vlaneseq
  %v936 = vshrl.u32 %v935, 7
  %v937 = vsub.s32 0, %v936
  %v938 = vrot.slane %v933, %v937
  %v939 = vlaneseq
  %v940 = vshrl.u32 %v939, 7
  %v941 = vsub.s32 1, %v940
  %v942 = vrot.slane %v933, %v941
  %v943 = vlaneseq
  %v944 = vshrl.u32 %v943, 7
  %v945 = vsub.s32 2, %v944
  %v946 = vrot.slane %v933, %v945
  %v947 = vlaneseq
  %v948 = vshrl.u32 %v947, 7
  %v949 = vsub.s32 3, %v948
  %v950 = vrot.slane %v933, %v949
  %v951 = vlaneseq
  %v952 = vshrl.u32 %v951, 7
  %v953 = vsub.s32 4, %v952
  %v954 = vrot.slane %v933, %v953
  %v955 = vlaneseq
  %v956 = vshrl.u32 %v955, 7
  %v957 = vsub.s32 5, %v956
  %v958 = vrot.slane %v933, %v957
  %v959 = vlaneseq
  %v960 = vshrl.u32 %v959, 7
  %v961 = vsub.s32 6, %v960
  %v962 = vrot.slane %v933, %v961
  %v1226 = vunpack.c.l.b16 %v677
  %v1227 = vunpack.c.h.b16 %v677
  %v1228 = vunpack.c.l.b16 %v678
  %v1229 = vunpack.c.h.b16 %v678
  %v1230 = vunpack.c.l.b16 %v679
  %v1231 = vunpack.c.h.b16 %v679
  %v1232 = vunpack.c.l.b16 %v680
  %v1233 = vunpack.c.l.b16 %v681
  %v1234 = vunpack.c.h.b16 %v681
  %v1235 = vunpack.c.l.b16 %v682
  %v1236 = vunpack.c.h.b16 %v682
  %v1237 = vunpack.c.l.b16 %v683
  %v1238 = vunpack.c.h.b16 %v683
  %v1239 = vunpack.c.l.b16 %v684
  %v1240 = vunpack.c.l.b16 %v685
  %v1241 = vunpack.c.h.b16 %v685
  %v1242 = vunpack.c.l.b16 %v686
  %v1243 = vunpack.c.h.b16 %v686
  %v1244 = vunpack.c.l.b16 %v687
  %v1245 = vunpack.c.h.b16 %v687
  %v1246 = vunpack.c.l.b16 %v688
  %v1247 = vunpack.c.l.b16 %v689
  %v1248 = vunpack.c.h.b16 %v689
  %v1249 = vunpack.c.l.b16 %v690
  %v1250 = vunpack.c.h.b16 %v690
  %v1251 = vunpack.c.l.b16 %v691
  %v1252 = vunpack.c.h.b16 %v691
  %v1253 = vunpack.c.l.b16 %v692
  %v1254 = vunpack.c.l.b16 %v693
  %v1255 = vunpack.c.h.b16 %v693
  %v1256 = vunpack.c.l.b16 %v694
  %v1257 = vunpack.c.h.b16 %v694
  %v1258 = vunpack.c.l.b16 %v695
  %v1259 = vunpack.c.h.b16 %v695
  %v1260 = vunpack.c.l.b16 %v696
  %v1261 = vunpack.c.l.b16 %v697
  %v1262 = vunpack.c.h.b16 %v697
  %v1263 = vunpack.c.l.b16 %v698
  %v1264 = vunpack.c.h.b16 %v698
  %v1265 = vunpack.c.l.b16 %v699
  %v1266 = vunpack.c.h.b16 %v699
  %v1267 = vunpack.c.l.b16 %v700
  %v1268 = vunpack.c.l.b16 %v701
  %v1269 = vunpack.c.h.b16 %v701
  %v1270 = vunpack.c.l.b16 %v702
  %v1271 = vunpack.c.h.b16 %v702
  %v1272 = vunpack.c.l.b16 %v703
  %v1273 = vunpack.c.h.b16 %v703
  %v1274 = vunpack.c.l.b16 %v704
  %v1275 = vunpack.c.l.b16 %v705
  %v1276 = vunpack.c.h.b16 %v705
  %v1277 = vunpack.c.l.b16 %v706
  %v1278 = vunpack.c.h.b16 %v706
  %v1279 = vunpack.c.l.b16 %v707
  %v1280 = vunpack.c.h.b16 %v707
  %v1281 = vunpack.c.l.b16 %v708
  %v1282 = vunpack.c.l.b16 %v709
  %v1283 = vunpack.c.h.b16 %v709
  %v1284 = vunpack.c.l.b16 %v710
  %v1285 = vunpack.c.h.b16 %v710
  %v1286 = vunpack.c.l.b16 %v711
  %v1287 = vunpack.c.h.b16 %v711
  %v1288 = vunpack.c.l.b16 %v712
  %v1289 = vunpack.c.l.b16 %v713
  %v1290 = vunpack.c.h.b16 %v713
  %v1291 = vunpack.c.l.b16 %v714
  %v1292 = vunpack.c.h.b16 %v714
  %v1293 = vunpack.c.l.b16 %v715
  %v1294 = vunpack.c.h.b16 %v715
  %v1295 = vunpack.c.l.b16 %v716
  %v1296 = vunpack.c.l.b16 %v717
  %v1297 = vunpack.c.h.b16 %v717
  %v1298 = vunpack.c.l.b16 %v718
  %v1299 = vunpack.c.h.b16 %v718
  %v1300 = vunpack.c.l.b16 %v719
  %v1301 = vunpack.c.h.b16 %v719
  %v1302 = vunpack.c.l.b16 %v720
  %v1303 = vunpack.c.l.b16 %v721
  %v1304 = vunpack.c.h.b16 %v721
  %v1305 = vunpack.c.l.b16 %v722
  %v1306 = vunpack.c.h.b16 %v722
  %v1307 = vunpack.c.l.b16 %v723
  %v1308 = vunpack.c.h.b16 %v723
  %v1309 = vunpack.c.l.b16 %v724
  %v1310 = vunpack.c.l.b16 %v725
  %v1311 = vunpack.c.h.b16 %v725
  %v1312 = vunpack.c.l.b16 %v726
  %v1313 = vunpack.c.h.b16 %v726
  %v1314 = vunpack.c.l.b16 %v727
  %v1315 = vunpack.c.h.b16 %v727
  %v1316 = vunpack.c.l.b16 %v728
  %v1317 = vunpack.c.l.b16 %v729
  %v1318 = vunpack.c.h.b16 %v729
  %v1319 = vunpack.c.l.b16 %v730
  %v1320 = vunpack.c.h.b16 %v730
  %v1321 = vunpack.c.l.b16 %v731
  %v1322 = vunpack.c.h.b16 %v731
  %v1323 = vunpack.c.l.b16 %v732
  %v1324 = vunpack.c.l.b16 %v733
  %v1325 = vunpack.c.h.b16 %v733
  %v1326 = vunpack.c.l.b16 %v734
  %v1327 = vunpack.c.h.b16 %v734
  %v1328 = vunpack.c.l.b16 %v735
  %v1329 = vunpack.c.h.b16 %v735
  %v1330 = vunpack.c.l.b16 %v736
  %v1331 = vunpack.c.l.b16 %v737
  %v1332 = vunpack.c.h.b16 %v737
  %v1333 = vunpack.c.l.b16 %v738
  %v1334 = vunpack.c.h.b16 %v738
  %v1335 = vunpack.c.l.b16 %v739
  %v1336 = vunpack.c.h.b16 %v739
  %v1337 = vunpack.c.l.b16 %v740
  %v1338 = vunpack.c.l.b16 %v741
  %v1339 = vunpack.c.h.b16 %v741
  %v1340 = vunpack.c.l.b16 %v742
  %v1341 = vunpack.c.h.b16 %v742
  %v1342 = vunpack.c.l.b16 %v743
  %v1343 = vunpack.c.h.b16 %v743
  %v1344 = vunpack.c.l.b16 %v744
  %v1345 = vunpack.c.l.b16 %v745
  %v1346 = vunpack.c.h.b16 %v745
  %v1347 = vunpack.c.l.b16 %v746
  %v1348 = vunpack.c.h.b16 %v746
  %v1349 = vunpack.c.l.b16 %v747
  %v1350 = vunpack.c.h.b16 %v747
  %v1351 = vunpack.c.l.b16 %v748
  %v1352 = vunpack.c.l.b16 %v749
  %v1353 = vunpack.c.h.b16 %v749
  %v1354 = vunpack.c.l.b16 %v750
  %v1355 = vunpack.c.h.b16 %v750
  %v1356 = vunpack.c.l.b16 %v751
  %v1357 = vunpack.c.h.b16 %v751
  %v1358 = vunpack.c.l.b16 %v752
  %v1359 = vunpack.c.l.b16 %v753
  %v1360 = vunpack.c.h.b16 %v753
  %v1361 = vunpack.c.l.b16 %v754
  %v1362 = vunpack.c.h.b16 %v754
  %v1363 = vunpack.c.l.b16 %v755
  %v1364 = vunpack.c.h.b16 %v755
  %v1365 = vunpack.c.l.b16 %v756
  %v1366 = vunpack.c.l.b16 %v757
  %v1367 = vunpack.c.h.b16 %v757
  %v1368 = vunpack.c.l.b16 %v758
  %v1369 = vunpack.c.h.b16 %v758
  %v1370 = vunpack.c.l.b16 %v759
  %v1371 = vunpack.c.h.b16 %v759
  %v1372 = vunpack.c.l.b16 %v760
  %v1373 = vunpack.c.l.b16 %v761
  %v1374 = vunpack.c.h.b16 %v761
  %v1375 = vunpack.c.l.b16 %v762
  %v1376 = vunpack.c.h.b16 %v762
  %v1377 = vunpack.c.l.b16 %v763
  %v1378 = vunpack.c.h.b16 %v763
  %v1379 = vunpack.c.l.b16 %v764
  %v1380 = vunpack.c.l.b16 %v765
  %v1381 = vunpack.c.h.b16 %v765
  %v1382 = vunpack.c.l.b16 %v766
  %v1383 = vunpack.c.h.b16 %v766
  %v1384 = vunpack.c.l.b16 %v767
  %v1385 = vunpack.c.h.b16 %v767
  %v1386 = vunpack.c.l.b16 %v768
  %v1387 = vunpack.c.l.b16 %v769
  %v1388 = vunpack.c.h.b16 %v769
  %v1389 = vunpack.c.l.b16 %v770
  %v1390 = vunpack.c.h.b16 %v770
  %v1391 = vunpack.c.l.b16 %v771
  %v1392 = vunpack.c.h.b16 %v771
  %v1393 = vunpack.c.l.b16 %v772
  %v1394 = vunpack.c.l.b16 %v773
  %v1395 = vunpack.c.h.b16 %v773
  %v1396 = vunpack.c.l.b16 %v774
  %v1397 = vunpack.c.h.b16 %v774
  %v1398 = vunpack.c.l.b16 %v775
  %v1399 = vunpack.c.h.b16 %v775
  %v1400 = vunpack.c.l.b16 %v776
  %v1401 = vunpack.c.l.b16 %v777
  %v1402 = vunpack.c.h.b16 %v777
  %v1403 = vunpack.c.l.b16 %v778
  %v1404 = vunpack.c.h.b16 %v778
  %v1405 = vunpack.c.l.b16 %v779
  %v1406 = vunpack.c.h.b16 %v779
  %v1407 = vunpack.c.l.b16 %v780
  %v1408 = vunpack.c.l.b16 %v781
  %v1409 = vunpack.c.h.b16 %v781
  %v1410 = vunpack.c.l.b16 %v782
  %v1411 = vunpack.c.h.b16 %v782
  %v1412 = vunpack.c.l.b16 %v783
  %v1413 = vunpack.c.h.b16 %v783
  %v1414 = vunpack.c.l.b16 %v784
  %v1415 = vunpack.c.l.b16 %v785
  %v1416 = vunpack.c.h.b16 %v785
  %v1417 = vunpack.c.l.b16 %v786
  %v1418 = vunpack.c.h.b16 %v786
  %v1419 = vunpack.c.l.b16 %v787
  %v1420 = vunpack.c.h.b16 %v787
  %v1421 = vunpack.c.l.b16 %v788
  %v1422 = vunpack.c.l.b16 %v789
  %v1423 = vunpack.c.h.b16 %v789
  %v1424 = vunpack.c.l.b16 %v790
  %v1425 = vunpack.c.h.b16 %v790
  %v1426 = vunpack.c.l.b16 %v791
  %v1427 = vunpack.c.h.b16 %v791
  %v1428 = vunpack.c.l.b16 %v792
  %v1429 = vunpack.c.l.b16 %v793
  %v1430 = vunpack.c.h.b16 %v793
  %v1431 = vunpack.c.l.b16 %v794
  %v1432 = vunpack.c.h.b16 %v794
  %v1433 = vunpack.c.l.b16 %v795
  %v1434 = vunpack.c.h.b16 %v795
  %v1435 = vunpack.c.l.b16 %v796
  %v1436 = vunpack.c.l.b16 %v797
  %v1437 = vunpack.c.h.b16 %v797
  %v1438 = vunpack.c.l.b16 %v798
  %v1439 = vunpack.c.h.b16 %v798
  %v1440 = vunpack.c.l.b16 %v799
  %v1441 = vunpack.c.h.b16 %v799
  %v1442 = vunpack.c.l.b16 %v800
  %v1443 = vunpack.c.l.b16 %v801
  %v1444 = vunpack.c.h.b16 %v801
  %v1445 = vunpack.c.l.b16 %v802
  %v1446 = vunpack.c.h.b16 %v802
  %v1447 = vunpack.c.l.b16 %v803
  %v1448 = vunpack.c.h.b16 %v803
  %v1449 = vunpack.c.l.b16 %v804
  %v1450 = vunpack.c.l.b16 %v805
  %v1451 = vunpack.c.h.b16 %v805
  %v1452 = vunpack.c.l.b16 %v806
  %v1453 = vunpack.c.h.b16 %v806
  %v1454 = vunpack.c.l.b16 %v807
  %v1455 = vunpack.c.h.b16 %v807
  %v1456 = vunpack.c.l.b16 %v808
  %v1457 = vunpack.c.l.b16 %v809
  %v1458 = vunpack.c.h.b16 %v809
  %v1459 = vunpack.c.l.b16 %v810
  %v1460 = vunpack.c.h.b16 %v810
  %v1461 = vunpack.c.l.b16 %v811
  %v1462 = vunpack.c.h.b16 %v811
  %v1463 = vunpack.c.l.b16 %v812
  %v1464 = vunpack.c.l.b16 %v813
  %v1465 = vunpack.c.h.b16 %v813
  %v1466 = vunpack.c.l.b16 %v814
  %v1467 = vunpack.c.h.b16 %v814
  %v1468 = vunpack.c.l.b16 %v815
  %v1469 = vunpack.c.h.b16 %v815
  %v1470 = vunpack.c.l.b16 %v816
  %v1471 = vunpack.c.l.b16 %v817
  %v1472 = vunpack.c.h.b16 %v817
  %v1473 = vunpack.c.l.b16 %v818
  %v1474 = vunpack.c.h.b16 %v818
  %v1475 = vunpack.c.l.b16 %v819
  %v1476 = vunpack.c.h.b16 %v819
  %v1477 = vunpack.c.l.b16 %v820
  %v1478 = vunpack.c.l.b16 %v821
  %v1479 = vunpack.c.h.b16 %v821
  %v1480 = vunpack.c.l.b16 %v822
  %v1481 = vunpack.c.h.b16 %v822
  %v1482 = vunpack.c.l.b16 %v823
  %v1483 = vunpack.c.h.b16 %v823
  %v1484 = vunpack.c.l.b16 %v824
  %v1485 = vunpack.c.l.b16 %v825
  %v1486 = vunpack.c.h.b16 %v825
  %v1487 = vunpack.c.l.b16 %v826
  %v1488 = vunpack.c.h.b16 %v826
  %v1489 = vunpack.c.l.b16 %v827
  %v1490 = vunpack.c.h.b16 %v827
  %v1491 = vunpack.c.l.b16 %v828
  %v1492 = vunpack.c.l.b16 %v829
  %v1493 = vunpack.c.h.b16 %v829
  %v1494 = vunpack.c.l.b16 %v830
  %v1495 = vunpack.c.h.b16 %v830
  %v1496 = vunpack.c.l.b16 %v831
  %v1497 = vunpack.c.h.b16 %v831
  %v1498 = vunpack.c.l.b16 %v832
  %v1499 = vunpack.c.l.b16 %v833
  %v1500 = vunpack.c.h.b16 %v833
  %v1501 = vunpack.c.l.b16 %v834
  %v1502 = vunpack.c.h.b16 %v834
  %v1503 = vunpack.c.l.b16 %v835
  %v1504 = vunpack.c.h.b16 %v835
  %v1505 = vunpack.c.l.b16 %v836
  %v1506 = vunpack.c.l.b16 %v837
  %v1507 = vunpack.c.h.b16 %v837
  %v1508 = vunpack.c.l.b16 %v838
  %v1509 = vunpack.c.h.b16 %v838
  %v1510 = vunpack.c.l.b16 %v839
  %v1511 = vunpack.c.h.b16 %v839
  %v1512 = vunpack.c.l.b16 %v840
  %v1513 = vunpack.c.l.b16 %v841
  %v1514 = vunpack.c.h.b16 %v841
  %v1515 = vunpack.c.l.b16 %v842
  %v1516 = vunpack.c.h.b16 %v842
  %v1517 = vunpack.c.l.b16 %v843
  %v1518 = vunpack.c.h.b16 %v843
  %v1519 = vunpack.c.l.b16 %v844
  %v1520 = vunpack.c.l.b16 %v845
  %v1521 = vunpack.c.h.b16 %v845
  %v1522 = vunpack.c.l.b16 %v846
  %v1523 = vunpack.c.h.b16 %v846
  %v1524 = vunpack.c.l.b16 %v847
  %v1525 = vunpack.c.h.b16 %v847
  %v1526 = vunpack.c.l.b16 %v848
  %v1527 = vunpack.c.l.b16 %v849
  %v1528 = vunpack.c.h.b16 %v849
  %v1529 = vunpack.c.l.b16 %v850
  %v1530 = vunpack.c.h.b16 %v850
  %v1531 = vunpack.c.l.b16 %v851
  %v1532 = vunpack.c.h.b16 %v851
  %v1533 = vunpack.c.l.b16 %v852
  %v1534 = vunpack.c.l.b16 %v853
  %v1535 = vunpack.c.h.b16 %v853
  %v1536 = vunpack.c.l.b16 %v854
  %v1537 = vunpack.c.h.b16 %v854
  %v1538 = vunpack.c.l.b16 %v855
  %v1539 = vunpack.c.h.b16 %v855
  %v1540 = vunpack.c.l.b16 %v856
  %v1541 = vunpack.c.l.b16 %v857
  %v1542 = vunpack.c.h.b16 %v857
  %v1543 = vunpack.c.l.b16 %v858
  %v1544 = vunpack.c.h.b16 %v858
  %v1545 = vunpack.c.l.b16 %v859
  %v1546 = vunpack.c.h.b16 %v859
  %v1547 = vunpack.c.l.b16 %v860
  %v1548 = vunpack.c.l.b16 %v861
  %v1549 = vunpack.c.h.b16 %v861
  %v1550 = vunpack.c.l.b16 %v862
  %v1551 = vunpack.c.h.b16 %v862
  %v1552 = vunpack.c.l.b16 %v863
  %v1553 = vunpack.c.h.b16 %v863
  %v1554 = vunpack.c.l.b16 %v864
  %v1555 = vunpack.c.l.b16 %v865
  %v1556 = vunpack.c.h.b16 %v865
  %v1557 = vunpack.c.l.b16 %v866
  %v1558 = vunpack.c.h.b16 %v866
  %v1559 = vunpack.c.l.b16 %v867
  %v1560 = vunpack.c.h.b16 %v867
  %v1561 = vunpack.c.l.b16 %v868
  %v1562 = vunpack.c.l.b16 %v869
  %v1563 = vunpack.c.h.b16 %v869
  %v1564 = vunpack.c.l.b16 %v870
  %v1565 = vunpack.c.h.b16 %v870
  %v1566 = vunpack.c.l.b16 %v871
  %v1567 = vunpack.c.h.b16 %v871
  %v1568 = vunpack.c.l.b16 %v872
  %v1569 = vunpack.c.l.b16 %v873
  %v1570 = vunpack.c.h.b16 %v873
  %v1571 = vunpack.c.l.b16 %v874
  %v1572 = vunpack.c.h.b16 %v874
  %v1573 = vunpack.c.l.b16 %v875
  %v1574 = vunpack.c.h.b16 %v875
  %v1575 = vunpack.c.l.b16 %v876
  %v1576 = vunpack.c.l.b16 %v877
  %v1577 = vunpack.c.h.b16 %v877
  %v1578 = vunpack.c.l.b16 %v878
  %v1579 = vunpack.c.h.b16 %v878
  %v1580 = vunpack.c.l.b16 %v879
  %v1581 = vunpack.c.h.b16 %v879
  %v1582 = vunpack.c.l.b16 %v880
  %v1583 = vunpack.c.l.b16 %v881
  %v1584 = vunpack.c.h.b16 %v881
  %v1585 = vunpack.c.l.b16 %v882
  %v1586 = vunpack.c.h.b16 %v882
  %v1587 = vunpack.c.l.b16 %v883
  %v1588 = vunpack.c.h.b16 %v883
  %v1589 = vunpack.c.l.b16 %v884
  %v1590 = vunpack.c.l.b16 %v885
  %v1591 = vunpack.c.h.b16 %v885
  %v1592 = vunpack.c.l.b16 %v886
  %v1593 = vunpack.c.h.b16 %v886
  %v1594 = vunpack.c.l.b16 %v887
  %v1595 = vunpack.c.h.b16 %v887
  %v1596 = vunpack.c.l.b16 %v888
  %v1597 = vunpack.c.l.b16 %v889
  %v1598 = vunpack.c.h.b16 %v889
  %v1599 = vunpack.c.l.b16 %v890
  %v1600 = vunpack.c.h.b16 %v890
  %v1601 = vunpack.c.l.b16 %v891
  %v1602 = vunpack.c.h.b16 %v891
  %v1603 = vunpack.c.l.b16 %v892
  %v1604 = vunpack.c.l.b16 %v893
  %v1605 = vunpack.c.h.b16 %v893
  %v1606 = vunpack.c.l.b16 %v894
  %v1607 = vunpack.c.h.b16 %v894
  %v1608 = vunpack.c.l.b16 %v895
  %v1609 = vunpack.c.h.b16 %v895
  %v1610 = vunpack.c.l.b16 %v896
  %v1611 = vunpack.c.l.b16 %v897
  %v1612 = vunpack.c.h.b16 %v897
  %v1613 = vunpack.c.l.b16 %v898
  %v1614 = vunpack.c.h.b16 %v898
  %v1615 = vunpack.c.l.b16 %v899
  %v1616 = vunpack.c.h.b16 %v899
  %v1617 = vunpack.c.l.b16 %v900
  %v1618 = vunpack.c.l.b16 %v901
  %v1619 = vunpack.c.h.b16 %v901
  %v1620 = vunpack.c.l.b16 %v902
  %v1621 = vunpack.c.h.b16 %v902
  %v1622 = vunpack.c.l.b16 %v903
  %v1623 = vunpack.c.h.b16 %v903
  %v1624 = vunpack.c.l.b16 %v904
  %v1625 = vunpack.c.l.b16 %v905
  %v1626 = vunpack.c.h.b16 %v905
  %v1627 = vunpack.c.l.b16 %v906
  %v1628 = vunpack.c.h.b16 %v906
  %v1629 = vunpack.c.l.b16 %v907
  %v1630 = vunpack.c.h.b16 %v907
  %v1631 = vunpack.c.l.b16 %v908
  %v1632 = vunpack.c.l.b16 %v909
  %v1633 = vunpack.c.h.b16 %v909
  %v1634 = vunpack.c.l.b16 %v910
  %v1635 = vunpack.c.h.b16 %v910
  %v1636 = vunpack.c.l.b16 %v911
  %v1637 = vunpack.c.h.b16 %v911
  %v1638 = vunpack.c.l.b16 %v912
  %v1639 = vunpack.c.l.b16 %v913
  %v1640 = vunpack.c.h.b16 %v913
  %v1641 = vunpack.c.l.b16 %v914
  %v1642 = vunpack.c.h.b16 %v914
  %v1643 = vunpack.c.l.b16 %v915
  %v1644 = vunpack.c.h.b16 %v915
  %v1645 = vunpack.c.l.b16 %v916
  %v1646 = vunpack.c.l.b16 %v917
  %v1647 = vunpack.c.h.b16 %v917
  %v1648 = vunpack.c.l.b16 %v918
  %v1649 = vunpack.c.h.b16 %v918
  %v1650 = vunpack.c.l.b16 %v919
  %v1651 = vunpack.c.h.b16 %v919
  %v1652 = vunpack.c.l.b16 %v920
  %v1653 = vunpack.c.l.b16 %v921
  %v1654 = vunpack.c.h.b16 %v921
  %v1655 = vunpack.c.l.b16 %v922
  %v1656 = vunpack.c.h.b16 %v922
  %v1657 = vunpack.c.l.b16 %v923
  %v1658 = vunpack.c.h.b16 %v923
  %v1659 = vunpack.c.l.b16 %v924
  %v1660 = vunpack.c.l.b16 %v925
  %v1661 = vunpack.c.h.b16 %v925
  %v1662 = vunpack.c.l.b16 %v926
  %v1663 = vunpack.c.h.b16 %v926
  %v1664 = vunpack.c.l.b16 %v927
  %v1665 = vunpack.c.h.b16 %v927
  %v1666 = vunpack.c.l.b16 %v928
  %v1667 = vunpack.c.l.b16 %v929
  %v1668 = vunpack.c.h.b16 %v929
  %v1669 = vunpack.c.l.b16 %v930
  %v1670 = vunpack.c.h.b16 %v930
  %v1671 = vunpack.c.l.b16 %v931
  %v1672 = vunpack.c.h.b16 %v931
  %v1673 = vunpack.c.l.b16 %v932
  %v1674 = vpack.c.b16 %v1233, %v1226
  %v1675 = vpack.c.b16 %v1234, %v1227
  %v1676 = vpack.c.b16 %v1235, %v1228
  %v1677 = vpack.c.b16 %v1236, %v1229
  %v1678 = vpack.c.b16 %v1237, %v1230
  %v1679 = vpack.c.b16 %v1238, %v1231
  %v1680 = vpack.c.b16 %v1239, %v1232
  %v1681 = vpack.c.b16 %v1247, %v1240
  %v1682 = vpack.c.b16 %v1248, %v1241
  %v1683 = vpack.c.b16 %v1249, %v1242
  %v1684 = vpack.c.b16 %v1250, %v1243
  %v1685 = vpack.c.b16 %v1251, %v1244
  %v1686 = vpack.c.b16 %v1252, %v1245
  %v1687 = vpack.c.b16 %v1253, %v1246
  %v1688 = vpack.c.b16 %v1261, %v1254
  %v1689 = vpack.c.b16 %v1262, %v1255
  %v1690 = vpack.c.b16 %v1263, %v1256
  %v1691 = vpack.c.b16 %v1264, %v1257
  %v1692 = vpack.c.b16 %v1265, %v1258
  %v1693 = vpack.c.b16 %v1266, %v1259
  %v1694 = vpack.c.b16 %v1267, %v1260
  %v1695 = vpack.c.b16 %v1275, %v1268
  %v1696 = vpack.c.b16 %v1276, %v1269
  %v1697 = vpack.c.b16 %v1277, %v1270
  %v1698 = vpack.c.b16 %v1278, %v1271
  %v1699 = vpack.c.b16 %v1279, %v1272
  %v1700 = vpack.c.b16 %v1280, %v1273
  %v1701 = vpack.c.b16 %v1281, %v1274
  %v1702 = vpack.c.b16 %v1289, %v1282
  %v1703 = vpack.c.b16 %v1290, %v1283
  %v1704 = vpack.c.b16 %v1291, %v1284
  %v1705 = vpack.c.b16 %v1292, %v1285
  %v1706 = vpack.c.b16 %v1293, %v1286
  %v1707 = vpack.c.b16 %v1294, %v1287
  %v1708 = vpack.c.b16 %v1295, %v1288
  %v1709 = vpack.c.b16 %v1303, %v1296
  %v1710 = vpack.c.b16 %v1304, %v1297
  %v1711 = vpack.c.b16 %v1305, %v1298
  %v1712 = vpack.c.b16 %v1306, %v1299
  %v1713 = vpack.c.b16 %v1307, %v1300
  %v1714 = vpack.c.b16 %v1308, %v1301
  %v1715 = vpack.c.b16 %v1309, %v1302
  %v1716 = vpack.c.b16 %v1317, %v1310
  %v1717 = vpack.c.b16 %v1318, %v1311
  %v1718 = vpack.c.b16 %v1319, %v1312
  %v1719 = vpack.c.b16 %v1320, %v1313
  %v1720 = vpack.c.b16 %v1321, %v1314
  %v1721 = vpack.c.b16 %v1322, %v1315
  %v1722 = vpack.c.b16 %v1323, %v1316
  %v1723 = vpack.c.b16 %v1331, %v1324
  %v1724 = vpack.c.b16 %v1332, %v1325
  %v1725 = vpack.c.b16 %v1333, %v1326
  %v1726 = vpack.c.b16 %v1334, %v1327
  %v1727 = vpack.c.b16 %v1335, %v1328
  %v1728 = vpack.c.b16 %v1336, %v1329
  %v1729 = vpack.c.b16 %v1337, %v1330
  %v1730 = vpack.c.b16 %v1345, %v1338
  %v1731 = vpack.c.b16 %v1346, %v1339
  %v1732 = vpack.c.b16 %v1347, %v1340
  %v1733 = vpack.c.b16 %v1348, %v1341
  %v1734 = vpack.c.b16 %v1349, %v1342
  %v1735 = vpack.c.b16 %v1350, %v1343
  %v1736 = vpack.c.b16 %v1351, %v1344
  %v1737 = vpack.c.b16 %v1359, %v1352
  %v1738 = vpack.c.b16 %v1360, %v1353
  %v1739 = vpack.c.b16 %v1361, %v1354
  %v1740 = vpack.c.b16 %v1362, %v1355
  %v1741 = vpack.c.b16 %v1363, %v1356
  %v1742 = vpack.c.b16 %v1364, %v1357
  %v1743 = vpack.c.b16 %v1365, %v1358
  %v1744 = vpack.c.b16 %v1373, %v1366
  %v1745 = vpack.c.b16 %v1374, %v1367
  %v1746 = vpack.c.b16 %v1375, %v1368
  %v1747 = vpack.c.b16 %v1376, %v1369
  %v1748 = vpack.c.b16 %v1377, %v1370
  %v1749 = vpack.c.b16 %v1378, %v1371
  %v1750 = vpack.c.b16 %v1379, %v1372
  %v1751 = vpack.c.b16 %v1387, %v1380
  %v1752 = vpack.c.b16 %v1388, %v1381
  %v1753 = vpack.c.b16 %v1389, %v1382
  %v1754 = vpack.c.b16 %v1390, %v1383
  %v1755 = vpack.c.b16 %v1391, %v1384
  %v1756 = vpack.c.b16 %v1392, %v1385
  %v1757 = vpack.c.b16 %v1393, %v1386
  %v1758 = vpack.c.b16 %v1401, %v1394
  %v1759 = vpack.c.b16 %v1402, %v1395
  %v1760 = vpack.c.b16 %v1403, %v1396
  %v1761 = vpack.c.b16 %v1404, %v1397
  %v1762 = vpack.c.b16 %v1405, %v1398
  %v1763 = vpack.c.b16 %v1406, %v1399
  %v1764 = vpack.c.b16 %v1407, %v1400
  %v1765 = vpack.c.b16 %v1415, %v1408
  %v1766 = vpack.c.b16 %v1416, %v1409
  %v1767 = vpack.c.b16 %v1417, %v1410
  %v1768 = vpack.c.b16 %v1418, %v1411
  %v1769 = vpack.c.b16 %v1419, %v1412
  %v1770 = vpack.c.b16 %v1420, %v1413
  %v1771 = vpack.c.b16 %v1421, %v1414
  %v1772 = vpack.c.b16 %v1429, %v1422
  %v1773 = vpack.c.b16 %v1430, %v1423
  %v1774 = vpack.c.b16 %v1431, %v1424
  %v1775 = vpack.c.b16 %v1432, %v1425
  %v1776 = vpack.c.b16 %v1433, %v1426
  %v1777 = vpack.c.b16 %v1434, %v1427
  %v1778 = vpack.c.b16 %v1435, %v1428
  %v1779 = vpack.c.b16 %v1443, %v1436
  %v1780 = vpack.c.b16 %v1444, %v1437
  %v1781 = vpack.c.b16 %v1445, %v1438
  %v1782 = vpack.c.b16 %v1446, %v1439
  %v1783 = vpack.c.b16 %v1447, %v1440
  %v1784 = vpack.c.b16 %v1448, %v1441
  %v1785 = vpack.c.b16 %v1449, %v1442
  %v1786 = vpack.c.b16 %v1457, %v1450
  %v1787 = vpack.c.b16 %v1458, %v1451
  %v1788 = vpack.c.b16 %v1459, %v1452
  %v1789 = vpack.c.b16 %v1460, %v1453
  %v1790 = vpack.c.b16 %v1461, %v1454
  %v1791 = vpack.c.b16 %v1462, %v1455
  %v1792 = vpack.c.b16 %v1463, %v1456
  %v1793 = vpack.c.b16 %v1471, %v1464
  %v1794 = vpack.c.b16 %v1472, %v1465
  %v1795 = vpack.c.b16 %v1473, %v1466
  %v1796 = vpack.c.b16 %v1474, %v1467
  %v1797 = vpack.c.b16 %v1475, %v1468
  %v1798 = vpack.c.b16 %v1476, %v1469
  %v1799 = vpack.c.b16 %v1477, %v1470
  %v1800 = vpack.c.b16 %v1485, %v1478
  %v1801 = vpack.c.b16 %v1486, %v1479
  %v1802 = vpack.c.b16 %v1487, %v1480
  %v1803 = vpack.c.b16 %v1488, %v1481
  %v1804 = vpack.c.b16 %v1489, %v1482
  %v1805 = vpack.c.b16 %v1490, %v1483
  %v1806 = vpack.c.b16 %v1491, %v1484
  %v1807 = vpack.c.b16 %v1499, %v1492
  %v1808 = vpack.c.b16 %v1500, %v1493
  %v1809 = vpack.c.b16 %v1501, %v1494
  %v1810 = vpack.c.b16 %v1502, %v1495
  %v1811 = vpack.c.b16 %v1503, %v1496
  %v1812 = vpack.c.b16 %v1504, %v1497
  %v1813 = vpack.c.b16 %v1505, %v1498
  %v1814 = vpack.c.b16 %v1513, %v1506
  %v1815 = vpack.c.b16 %v1514, %v1507
  %v1816 = vpack.c.b16 %v1515, %v1508
  %v1817 = vpack.c.b16 %v1516, %v1509
  %v1818 = vpack.c.b16 %v1517, %v1510
  %v1819 = vpack.c.b16 %v1518, %v1511
  %v1820 = vpack.c.b16 %v1519, %v1512
  %v1821 = vpack.c.b16 %v1527, %v1520
  %v1822 = vpack.c.b16 %v1528, %v1521
  %v1823 = vpack.c.b16 %v1529, %v1522
  %v1824 = vpack.c.b16 %v1530, %v1523
  %v1825 = vpack.c.b16 %v1531, %v1524
  %v1826 = vpack.c.b16 %v1532, %v1525
  %v1827 = vpack.c.b16 %v1533, %v1526
  %v1828 = vpack.c.b16 %v1541, %v1534
  %v1829 = vpack.c.b16 %v1542, %v1535
  %v1830 = vpack.c.b16 %v1543, %v1536
  %v1831 = vpack.c.b16 %v1544, %v1537
  %v1832 = vpack.c.b16 %v1545, %v1538
  %v1833 = vpack.c.b16 %v1546, %v1539
  %v1834 = vpack.c.b16 %v1547, %v1540
  %v1835 = vpack.c.b16 %v1555, %v1548
  %v1836 = vpack.c.b16 %v1556, %v1549
  %v1837 = vpack.c.b16 %v1557, %v1550
  %v1838 = vpack.c.b16 %v1558, %v1551
  %v1839 = vpack.c.b16 %v1559, %v1552
  %v1840 = vpack.c.b16 %v1560, %v1553
  %v1841 = vpack.c.b16 %v1561, %v1554
  %v1842 = vpack.c.b16 %v1569, %v1562
  %v1843 = vpack.c.b16 %v1570, %v1563
  %v1844 = vpack.c.b16 %v1571, %v1564
  %v1845 = vpack.c.b16 %v1572, %v1565
  %v1846 = vpack.c.b16 %v1573, %v1566
  %v1847 = vpack.c.b16 %v1574, %v1567
  %v1848 = vpack.c.b16 %v1575, %v1568
  %v1849 = vpack.c.b16 %v1583, %v1576
  %v1850 = vpack.c.b16 %v1584, %v1577
  %v1851 = vpack.c.b16 %v1585, %v1578
  %v1852 = vpack.c.b16 %v1586, %v1579
  %v1853 = vpack.c.b16 %v1587, %v1580
  %v1854 = vpack.c.b16 %v1588, %v1581
  %v1855 = vpack.c.b16 %v1589, %v1582
  %v1856 = vpack.c.b16 %v1597, %v1590
  %v1857 = vpack.c.b16 %v1598, %v1591
  %v1858 = vpack.c.b16 %v1599, %v1592
  %v1859 = vpack.c.b16 %v1600, %v1593
  %v1860 = vpack.c.b16 %v1601, %v1594
  %v1861 = vpack.c.b16 %v1602, %v1595
  %v1862 = vpack.c.b16 %v1603, %v1596
  %v1863 = vpack.c.b16 %v1611, %v1604
  %v1864 = vpack.c.b16 %v1612, %v1605
  %v1865 = vpack.c.b16 %v1613, %v1606
  %v1866 = vpack.c.b16 %v1614, %v1607
  %v1867 = vpack.c.b16 %v1615, %v1608
  %v1868 = vpack.c.b16 %v1616, %v1609
  %v1869 = vpack.c.b16 %v1617, %v1610
  %v1870 = vpack.c.b16 %v1625, %v1618
  %v1871 = vpack.c.b16 %v1626, %v1619
  %v1872 = vpack.c.b16 %v1627, %v1620
  %v1873 = vpack.c.b16 %v1628, %v1621
  %v1874 = vpack.c.b16 %v1629, %v1622
  %v1875 = vpack.c.b16 %v1630, %v1623
  %v1876 = vpack.c.b16 %v1631, %v1624
  %v1877 = vpack.c.b16 %v1639, %v1632
  %v1878 = vpack.c.b16 %v1640, %v1633
  %v1879 = vpack.c.b16 %v1641, %v1634
  %v1880 = vpack.c.b16 %v1642, %v1635
  %v1881 = vpack.c.b16 %v1643, %v1636
  %v1882 = vpack.c.b16 %v1644, %v1637
  %v1883 = vpack.c.b16 %v1645, %v1638
  %v1884 = vpack.c.b16 %v1653, %v1646
  %v1885 = vpack.c.b16 %v1654, %v1647
  %v1886 = vpack.c.b16 %v1655, %v1648
  %v1887 = vpack.c.b16 %v1656, %v1649
  %v1888 = vpack.c.b16 %v1657, %v1650
  %v1889 = vpack.c.b16 %v1658, %v1651
  %v1890 = vpack.c.b16 %v1659, %v1652
  %v1891 = vpack.c.b16 %v1667, %v1660
  %v1892 = vpack.c.b16 %v1668, %v1661
  %v1893 = vpack.c.b16 %v1669, %v1662
  %v1894 = vpack.c.b16 %v1670, %v1663
  %v1895 = vpack.c.b16 %v1671, %v1664
  %v1896 = vpack.c.b16 %v1672, %v1665
  %v1897 = vpack.c.b16 %v1673, %v1666
  %2122 = vmatprep.subr.bf16.mxu0 %v1675
  %2123 = vmatpush1.bf16.msra.mxu0 %v1674
  %2124 = vmatprep.subr.bf16.mxu0 %v1682
  %2125 = vmatpush1.bf16.msra.mxu0 %v1681
  %2126 = vmatprep.subr.bf16.mxu0 %v1689
  %2127 = vmatpush1.bf16.msra.mxu0 %v1688
  %2128 = vmatprep.subr.bf16.mxu0 %v1696
  %2129 = vmatpush1.bf16.msra.mxu0 %v1695
  %2130 = vmatprep.subr.bf16.mxu0 %v1703
  %2131 = vmatpush1.bf16.msra.mxu0 %v1702
  %2132 = vmatprep.subr.bf16.mxu0 %v1710
  %2133 = vmatpush1.bf16.msra.mxu0 %v1709
  %2134 = vmatprep.subr.bf16.mxu0 %v1717
  %2135 = vmatpush1.bf16.msra.mxu0 %v1716
  %2136 = vmatprep.subr.bf16.mxu0 %v1724
  %2137 = vmatpush1.bf16.msra.mxu0 %v1723
  %2138 = vmatprep.subr.bf16.mxu0 %v1731
  %2139 = vmatpush1.bf16.msra.mxu0 %v1730
  %2140 = vmatprep.subr.bf16.mxu0 %v1738
  %2141 = vmatpush1.bf16.msra.mxu0 %v1737
  %2142 = vmatprep.subr.bf16.mxu0 %v1745
  %2143 = vmatpush1.bf16.msra.mxu0 %v1744
  %2144 = vmatprep.subr.bf16.mxu0 %v1752
  %2145 = vmatpush1.bf16.msra.mxu0 %v1751
  %2146 = vmatprep.subr.bf16.mxu0 %v1759
  %2147 = vmatpush1.bf16.msra.mxu0 %v1758
  %2148 = vmatprep.subr.bf16.mxu0 %v1766
  %2149 = vmatpush1.bf16.msra.mxu0 %v1765
  %2150 = vmatprep.subr.bf16.mxu0 %v1773
  %2151 = vmatpush1.bf16.msra.mxu0 %v1772
  %2152 = vmatprep.subr.bf16.mxu0 %v1780
  %2153 = vmatpush1.bf16.msra.mxu0 %v1779
  %2154 = vmatprep.mubr.bf16.mxu0 %v674
  %2155 = vmatmul.mubr.bf16.gmra.mrb[0].mxu0 %v673
  %v2156 = vpop.f32.mrb[0].mxu0
  %v2157 = vadd.f32 %v938, %v2156
  %v2158 = vpop.f32.mrb[0].mxu0
  %v2159 = vadd.f32 %v942, %v2158
  %v2160 = vpop.f32.mrb[0].mxu0
  %v2161 = vpop.f32.mrb[0].mxu0
  %2162 = vdwg.mxu0
  %2163 = vmatprep.subr.bf16.mxu0 %v1787
  %2164 = vmatpush1.bf16.msra.mxu0 %v1786
  %2165 = vmatprep.subr.bf16.mxu0 %v1794
  %2166 = vmatpush1.bf16.msra.mxu0 %v1793
  %2167 = vmatprep.subr.bf16.mxu0 %v1801
  %2168 = vmatpush1.bf16.msra.mxu0 %v1800
  %2169 = vmatprep.subr.bf16.mxu0 %v1808
  %2170 = vmatpush1.bf16.msra.mxu0 %v1807
  %2171 = vmatprep.subr.bf16.mxu0 %v1815
  %2172 = vmatpush1.bf16.msra.mxu0 %v1814
  %2173 = vmatprep.subr.bf16.mxu0 %v1822
  %2174 = vmatpush1.bf16.msra.mxu0 %v1821
  %2175 = vmatprep.subr.bf16.mxu0 %v1829
  %2176 = vmatpush1.bf16.msra.mxu0 %v1828
  %2177 = vmatprep.subr.bf16.mxu0 %v1836
  %2178 = vmatpush1.bf16.msra.mxu0 %v1835
  %2179 = vmatprep.subr.bf16.mxu0 %v1843
  %2180 = vmatpush1.bf16.msra.mxu0 %v1842
  %2181 = vmatprep.subr.bf16.mxu0 %v1850
  %2182 = vmatpush1.bf16.msra.mxu0 %v1849
  %2183 = vmatprep.subr.bf16.mxu0 %v1857
  %2184 = vmatpush1.bf16.msra.mxu0 %v1856
  %2185 = vmatprep.subr.bf16.mxu0 %v1864
  %2186 = vmatpush1.bf16.msra.mxu0 %v1863
  %2187 = vmatprep.subr.bf16.mxu0 %v1871
  %2188 = vmatpush1.bf16.msra.mxu0 %v1870
  %2189 = vmatprep.subr.bf16.mxu0 %v1878
  %2190 = vmatpush1.bf16.msra.mxu0 %v1877
  %2191 = vmatprep.subr.bf16.mxu0 %v1885
  %2192 = vmatpush1.bf16.msra.mxu0 %v1884
  %2193 = vmatprep.subr.bf16.mxu0 %v1892
  %2194 = vmatpush1.bf16.msra.mxu0 %v1891
  %2195 = vmatprep.mubr.bf16.mxu0 %v676
  %2196 = vmatmul.mubr.bf16.gmra.mrb[0].mxu0 %v675
  %v2197 = vpop.f32.mrb[0].mxu0
  %v2198 = vadd.f32 %v2157, %v2197
  %v2199 = vpop.f32.mrb[0].mxu0
  %v2200 = vadd.f32 %v2159, %v2199
  %v2201 = vpop.f32.mrb[0].mxu0
  %v2202 = vpop.f32.mrb[0].mxu0
  %2203 = vdwg.mxu0
  %2204 = vmatprep.subr.bf16.mxu0 %v1677
  %2205 = vmatpush1.bf16.msra.mxu0 %v1676
  %2206 = vmatprep.subr.bf16.mxu0 %v1684
  %2207 = vmatpush1.bf16.msra.mxu0 %v1683
  %2208 = vmatprep.subr.bf16.mxu0 %v1691
  %2209 = vmatpush1.bf16.msra.mxu0 %v1690
  %2210 = vmatprep.subr.bf16.mxu0 %v1698
  %2211 = vmatpush1.bf16.msra.mxu0 %v1697
  %2212 = vmatprep.subr.bf16.mxu0 %v1705
  %2213 = vmatpush1.bf16.msra.mxu0 %v1704
  %2214 = vmatprep.subr.bf16.mxu0 %v1712
  %2215 = vmatpush1.bf16.msra.mxu0 %v1711
  %2216 = vmatprep.subr.bf16.mxu0 %v1719
  %2217 = vmatpush1.bf16.msra.mxu0 %v1718
  %2218 = vmatprep.subr.bf16.mxu0 %v1726
  %2219 = vmatpush1.bf16.msra.mxu0 %v1725
  %2220 = vmatprep.subr.bf16.mxu0 %v1733
  %2221 = vmatpush1.bf16.msra.mxu0 %v1732
  %2222 = vmatprep.subr.bf16.mxu0 %v1740
  %2223 = vmatpush1.bf16.msra.mxu0 %v1739
  %2224 = vmatprep.subr.bf16.mxu0 %v1747
  %2225 = vmatpush1.bf16.msra.mxu0 %v1746
  %2226 = vmatprep.subr.bf16.mxu0 %v1754
  %2227 = vmatpush1.bf16.msra.mxu0 %v1753
  %2228 = vmatprep.subr.bf16.mxu0 %v1761
  %2229 = vmatpush1.bf16.msra.mxu0 %v1760
  %2230 = vmatprep.subr.bf16.mxu0 %v1768
  %2231 = vmatpush1.bf16.msra.mxu0 %v1767
  %2232 = vmatprep.subr.bf16.mxu0 %v1775
  %2233 = vmatpush1.bf16.msra.mxu0 %v1774
  %2234 = vmatprep.subr.bf16.mxu0 %v1782
  %2235 = vmatpush1.bf16.msra.mxu0 %v1781
  %2236 = vmatprep.mubr.bf16.mxu0 %v674
  %2237 = vmatmul.mubr.bf16.gmra.mrb[0].mxu0 %v673
  %v2238 = vpop.f32.mrb[0].mxu0
  %v2239 = vadd.f32 %v946, %v2238
  %v2240 = vpop.f32.mrb[0].mxu0
  %v2241 = vadd.f32 %v950, %v2240
  %v2242 = vpop.f32.mrb[0].mxu0
  %v2243 = vpop.f32.mrb[0].mxu0
  %2244 = vdwg.mxu0
  %2245 = vmatprep.subr.bf16.mxu0 %v1789
  %2246 = vmatpush1.bf16.msra.mxu0 %v1788
  %2247 = vmatprep.subr.bf16.mxu0 %v1796
  %2248 = vmatpush1.bf16.msra.mxu0 %v1795
  %2249 = vmatprep.subr.bf16.mxu0 %v1803
  %2250 = vmatpush1.bf16.msra.mxu0 %v1802
  %2251 = vmatprep.subr.bf16.mxu0 %v1810
  %2252 = vmatpush1.bf16.msra.mxu0 %v1809
  %2253 = vmatprep.subr.bf16.mxu0 %v1817
  %2254 = vmatpush1.bf16.msra.mxu0 %v1816
  %2255 = vmatprep.subr.bf16.mxu0 %v1824
  %2256 = vmatpush1.bf16.msra.mxu0 %v1823
  %2257 = vmatprep.subr.bf16.mxu0 %v1831
  %2258 = vmatpush1.bf16.msra.mxu0 %v1830
  %2259 = vmatprep.subr.bf16.mxu0 %v1838
  %2260 = vmatpush1.bf16.msra.mxu0 %v1837
  %2261 = vmatprep.subr.bf16.mxu0 %v1845
  %2262 = vmatpush1.bf16.msra.mxu0 %v1844
  %2263 = vmatprep.subr.bf16.mxu0 %v1852
  %2264 = vmatpush1.bf16.msra.mxu0 %v1851
  %2265 = vmatprep.subr.bf16.mxu0 %v1859
  %2266 = vmatpush1.bf16.msra.mxu0 %v1858
  %2267 = vmatprep.subr.bf16.mxu0 %v1866
  %2268 = vmatpush1.bf16.msra.mxu0 %v1865
  %2269 = vmatprep.subr.bf16.mxu0 %v1873
  %2270 = vmatpush1.bf16.msra.mxu0 %v1872
  %2271 = vmatprep.subr.bf16.mxu0 %v1880
  %2272 = vmatpush1.bf16.msra.mxu0 %v1879
  %2273 = vmatprep.subr.bf16.mxu0 %v1887
  %2274 = vmatpush1.bf16.msra.mxu0 %v1886
  %2275 = vmatprep.subr.bf16.mxu0 %v1894
  %2276 = vmatpush1.bf16.msra.mxu0 %v1893
  %2277 = vmatprep.mubr.bf16.mxu0 %v676
  %2278 = vmatmul.mubr.bf16.gmra.mrb[0].mxu0 %v675
  %v2279 = vpop.f32.mrb[0].mxu0
  %v2280 = vadd.f32 %v2239, %v2279
  %v2281 = vpop.f32.mrb[0].mxu0
  %v2282 = vadd.f32 %v2241, %v2281
  %v2283 = vpop.f32.mrb[0].mxu0
  %v2284 = vpop.f32.mrb[0].mxu0
  %2285 = vdwg.mxu0
  %2286 = vmatprep.subr.bf16.mxu0 %v1679
  %2287 = vmatpush1.bf16.msra.mxu0 %v1678
  %2288 = vmatprep.subr.bf16.mxu0 %v1686
  %2289 = vmatpush1.bf16.msra.mxu0 %v1685
  %2290 = vmatprep.subr.bf16.mxu0 %v1693
  %2291 = vmatpush1.bf16.msra.mxu0 %v1692
  %2292 = vmatprep.subr.bf16.mxu0 %v1700
  %2293 = vmatpush1.bf16.msra.mxu0 %v1699
  %2294 = vmatprep.subr.bf16.mxu0 %v1707
  %2295 = vmatpush1.bf16.msra.mxu0 %v1706
  %2296 = vmatprep.subr.bf16.mxu0 %v1714
  %2297 = vmatpush1.bf16.msra.mxu0 %v1713
  %2298 = vmatprep.subr.bf16.mxu0 %v1721
  %2299 = vmatpush1.bf16.msra.mxu0 %v1720
  %2300 = vmatprep.subr.bf16.mxu0 %v1728
  %2301 = vmatpush1.bf16.msra.mxu0 %v1727
  %2302 = vmatprep.subr.bf16.mxu0 %v1735
  %2303 = vmatpush1.bf16.msra.mxu0 %v1734
  %2304 = vmatprep.subr.bf16.mxu0 %v1742
  %2305 = vmatpush1.bf16.msra.mxu0 %v1741
  %2306 = vmatprep.subr.bf16.mxu0 %v1749
  %2307 = vmatpush1.bf16.msra.mxu0 %v1748
  %2308 = vmatprep.subr.bf16.mxu0 %v1756
  %2309 = vmatpush1.bf16.msra.mxu0 %v1755
  %2310 = vmatprep.subr.bf16.mxu0 %v1763
  %2311 = vmatpush1.bf16.msra.mxu0 %v1762
  %2312 = vmatprep.subr.bf16.mxu0 %v1770
  %2313 = vmatpush1.bf16.msra.mxu0 %v1769
  %2314 = vmatprep.subr.bf16.mxu0 %v1777
  %2315 = vmatpush1.bf16.msra.mxu0 %v1776
  %2316 = vmatprep.subr.bf16.mxu0 %v1784
  %2317 = vmatpush1.bf16.msra.mxu0 %v1783
  %2318 = vmatprep.mubr.bf16.mxu0 %v674
  %2319 = vmatmul.mubr.bf16.gmra.mrb[0].mxu0 %v673
  %v2320 = vpop.f32.mrb[0].mxu0
  %v2321 = vadd.f32 %v954, %v2320
  %v2322 = vpop.f32.mrb[0].mxu0
  %v2323 = vadd.f32 %v958, %v2322
  %v2324 = vpop.f32.mrb[0].mxu0
  %v2325 = vpop.f32.mrb[0].mxu0
  %2326 = vdwg.mxu0
  %2327 = vmatprep.subr.bf16.mxu0 %v1791
  %2328 = vmatpush1.bf16.msra.mxu0 %v1790
  %2329 = vmatprep.subr.bf16.mxu0 %v1798
  %2330 = vmatpush1.bf16.msra.mxu0 %v1797
  %2331 = vmatprep.subr.bf16.mxu0 %v1805
  %2332 = vmatpush1.bf16.msra.mxu0 %v1804
  %2333 = vmatprep.subr.bf16.mxu0 %v1812
  %2334 = vmatpush1.bf16.msra.mxu0 %v1811
  %2335 = vmatprep.subr.bf16.mxu0 %v1819
  %2336 = vmatpush1.bf16.msra.mxu0 %v1818
  %2337 = vmatprep.subr.bf16.mxu0 %v1826
  %2338 = vmatpush1.bf16.msra.mxu0 %v1825
  %2339 = vmatprep.subr.bf16.mxu0 %v1833
  %2340 = vmatpush1.bf16.msra.mxu0 %v1832
  %2341 = vmatprep.subr.bf16.mxu0 %v1840
  %2342 = vmatpush1.bf16.msra.mxu0 %v1839
  %2343 = vmatprep.subr.bf16.mxu0 %v1847
  %2344 = vmatpush1.bf16.msra.mxu0 %v1846
  %2345 = vmatprep.subr.bf16.mxu0 %v1854
  %2346 = vmatpush1.bf16.msra.mxu0 %v1853
  %2347 = vmatprep.subr.bf16.mxu0 %v1861
  %2348 = vmatpush1.bf16.msra.mxu0 %v1860
  %2349 = vmatprep.subr.bf16.mxu0 %v1868
  %2350 = vmatpush1.bf16.msra.mxu0 %v1867
  %2351 = vmatprep.subr.bf16.mxu0 %v1875
  %2352 = vmatpush1.bf16.msra.mxu0 %v1874
  %2353 = vmatprep.subr.bf16.mxu0 %v1882
  %2354 = vmatpush1.bf16.msra.mxu0 %v1881
  %2355 = vmatprep.subr.bf16.mxu0 %v1889
  %2356 = vmatpush1.bf16.msra.mxu0 %v1888
  %2357 = vmatprep.subr.bf16.mxu0 %v1896
  %2358 = vmatpush1.bf16.msra.mxu0 %v1895
  %2359 = vmatprep.mubr.bf16.mxu0 %v676
  %2360 = vmatmul.mubr.bf16.gmra.mrb[0].mxu0 %v675
  %v2361 = vpop.f32.mrb[0].mxu0
  %v2362 = vadd.f32 %v2321, %v2361
  %v2363 = vpop.f32.mrb[0].mxu0
  %v2364 = vadd.f32 %v2323, %v2363
  %v2365 = vpop.f32.mrb[0].mxu0
  %v2366 = vpop.f32.mrb[0].mxu0
  %2367 = vdwg.mxu0
  %2368 = vmatprep.subr.bf16.mxu0 0
  %2369 = vmatpush1.bf16.msra.mxu0 %v1680
  %2370 = vmatprep.subr.bf16.mxu0 0
  %2371 = vmatpush1.bf16.msra.mxu0 %v1687
  %2372 = vmatprep.subr.bf16.mxu0 0
  %2373 = vmatpush1.bf16.msra.mxu0 %v1694
  %2374 = vmatprep.subr.bf16.mxu0 0
  %2375 = vmatpush1.bf16.msra.mxu0 %v1701
  %2376 = vmatprep.subr.bf16.mxu0 0
  %2377 = vmatpush1.bf16.msra.mxu0 %v1708
  %2378 = vmatprep.subr.bf16.mxu0 0
  %2379 = vmatpush1.bf16.msra.mxu0 %v1715
  %2380 = vmatprep.subr.bf16.mxu0 0
  %2381 = vmatpush1.bf16.msra.mxu0 %v1722
  %2382 = vmatprep.subr.bf16.mxu0 0
  %2383 = vmatpush1.bf16.msra.mxu0 %v1729
  %2384 = vmatprep.subr.bf16.mxu0 0
  %2385 = vmatpush1.bf16.msra.mxu0 %v1736
  %2386 = vmatprep.subr.bf16.mxu0 0
  %2387 = vmatpush1.bf16.msra.mxu0 %v1743
  %2388 = vmatprep.subr.bf16.mxu0 0
  %2389 = vmatpush1.bf16.msra.mxu0 %v1750
  %2390 = vmatprep.subr.bf16.mxu0 0
  %2391 = vmatpush1.bf16.msra.mxu0 %v1757
  %2392 = vmatprep.subr.bf16.mxu0 0
  %2393 = vmatpush1.bf16.msra.mxu0 %v1764
  %2394 = vmatprep.subr.bf16.mxu0 0
  %2395 = vmatpush1.bf16.msra.mxu0 %v1771
  %2396 = vmatprep.subr.bf16.mxu0 0
  %2397 = vmatpush1.bf16.msra.mxu0 %v1778
  %2398 = vmatprep.subr.bf16.mxu0 0
  %2399 = vmatpush1.bf16.msra.mxu0 %v1785
  %2400 = vmatprep.mubr.bf16.mxu0 %v674
  %2401 = vmatmul.mubr.bf16.gmra.mrb[0].mxu0 %v673
  %v2402 = vpop.f32.mrb[0].mxu0
  %v2403 = vadd.f32 %v962, %v2402
  %v2404 = vpop.f32.mrb[0].mxu0
  %v2405 = vpop.f32.mrb[0].mxu0
  %v2406 = vpop.f32.mrb[0].mxu0
  %2407 = vdwg.mxu0
  %2408 = vmatprep.subr.bf16.mxu0 0
  %2409 = vmatpush1.bf16.msra.mxu0 %v1792
  %2410 = vmatprep.subr.bf16.mxu0 0
  %2411 = vmatpush1.bf16.msra.mxu0 %v1799
  %2412 = vmatprep.subr.bf16.mxu0 0
  %2413 = vmatpush1.bf16.msra.mxu0 %v1806
  %2414 = vmatprep.subr.bf16.mxu0 0
  %2415 = vmatpush1.bf16.msra.mxu0 %v1813
  %2416 = vmatprep.subr.bf16.mxu0 0
  %2417 = vmatpush1.bf16.msra.mxu0 %v1820
  %2418 = vmatprep.subr.bf16.mxu0 0
  %2419 = vmatpush1.bf16.msra.mxu0 %v1827
  %2420 = vmatprep.subr.bf16.mxu0 0
  %2421 = vmatpush1.bf16.msra.mxu0 %v1834
  %2422 = vmatprep.subr.bf16.mxu0 0
  %2423 = vmatpush1.bf16.msra.mxu0 %v1841
  %2424 = vmatprep.subr.bf16.mxu0 0
  %2425 = vmatpush1.bf16.msra.mxu0 %v1848
  %2426 = vmatprep.subr.bf16.mxu0 0
  %2427 = vmatpush1.bf16.msra.mxu0 %v1855
  %2428 = vmatprep.subr.bf16.mxu0 0
  %2429 = vmatpush1.bf16.msra.mxu0 %v1862
  %2430 = vmatprep.subr.bf16.mxu0 0
  %2431 = vmatpush1.bf16.msra.mxu0 %v1869
  %2432 = vmatprep.subr.bf16.mxu0 0
  %2433 = vmatpush1.bf16.msra.mxu0 %v1876
  %2434 = vmatprep.subr.bf16.mxu0 0
  %2435 = vmatpush1.bf16.msra.mxu0 %v1883
  %2436 = vmatprep.subr.bf16.mxu0 0
  %2437 = vmatpush1.bf16.msra.mxu0 %v1890
  %2438 = vmatprep.subr.bf16.mxu0 0
  %2439 = vmatpush1.bf16.msra.mxu0 %v1897
  %2440 = vmatprep.mubr.bf16.mxu0 %v676
  %2441 = vmatmul.mubr.bf16.gmra.mrb[0].mxu0 %v675
  %v2442 = vpop.f32.mrb[0].mxu0
  %v2443 = vadd.f32 %v2403, %v2442
  %v2444 = vpop.f32.mrb[0].mxu0
  %v2445 = vpop.f32.mrb[0].mxu0
  %v2446 = vpop.f32.mrb[0].mxu0
  %2447 = vdwg.mxu0
  %v2448 = vtanh.pop %v2198
  %v2449 = vtanh.pop %v2200
  %v2450 = vtanh.pop %v2280
  %v2451 = vtanh.pop %v2282
  %v2452 = vtanh.pop %v2362
  %v2453 = vtanh.pop %v2364
  %v2454 = vtanh.pop %v2443
  %2455 = vst [vmem:[%s7] sm:$0xff] %v2448
  %2456 = vst [vmem:[%s7 + $0x8] sm:$0xff] %v2449
  %2457 = vst [vmem:[%s7 + $0x10] sm:$0xff] %v2450
  %2458 = vst [vmem:[%s7 + $0x18] sm:$0xff] %v2451
  %2459 = vst [vmem:[%s7 + $0x20] sm:$0xff] %v2452
  %2460 = vst [vmem:[%s7 + $0x28] sm:$0xff] %v2453
  %2461 = vst [vmem:[%s7 + $0x30] sm:$0xff] %v2454
  // Predicated region
  $region30: #{generator_forward.1} parent=0 // pred_check
    _
  $region31: #{generator_forward.1} parent=0 // pred_check_branch
    %2463 = sbr.rel (0) target = $region33
  $region32: #{generator_forward.1} parent=0 // pred_region
    _
  $region33: #{generator_forward.1} parent=0 // pred_fallthru
    _
  // Predicated region
  $region34: #{generator_forward.1} parent=0 // pred_check
    _
  $region35: #{generator_forward.1} parent=0 // pred_check_branch
    %2465 = sbr.rel (0) target = $region37
  $region36: #{generator_forward.1} parent=0 // pred_region
    _
  $region37: #{generator_forward.1} parent=0 // pred_fallthru
    _

</llo_original>
